<compile_context>
chip_gen: v7x
topology: tpu7x:2x2x1
jax: 0.10.0
libtpu: 0.0.40
codegen_flags: <defaults>
</compile_context>

<pallas_src>
import jax
import jax.numpy as jnp
from jax.experimental import pallas as pl
from jax.experimental.pallas import tpu as pltpu


TEMPERATURE = 0.03
NEGATIVE_W = 0.8
LOGIT_SCALE = jnp.ones([], jnp.float32)  # deterministic init; unused in forward


def _row_tile(batch):
    """Row-tile size that divides the batch and respects (8,128) tiling.

    TM=128 matches the MXU M dimension on all chips (v6e could take 256 when
    B % 256 == 0, but 128 is universally safe and already saturates v5e).
    """
    if batch % 128 == 0:
        return 128
    for tm in (64, 32, 16, 8):
        if batch % tm == 0:
            return tm
    # TODO(synk): batches not divisible by 8 need row padding + mean masking.
    raise NotImplementedError("CrossCLR Pallas kernel needs batch % 8 == 0")


def _make_kernel(batch, tm, negative_weight):
    neg_w = float(negative_weight)

    def kernel(keys_ref, o_ref):
        # keys_ref: (2B, D) bf16, rows already L2-normalized and scaled by
        # sqrt(1/temperature); columns of the logits: [0:B]=video, [B:2B]=text.
        vrow0 = pl.multiple_of(pl.program_id(0) * tm, tm)
        trow0 = pl.multiple_of(batch + pl.program_id(0) * tm, tm)

        # ---- query tiles sliced from the resident key block (no extra DMA) ----
        qv = keys_ref[pl.ds(vrow0, tm), :]            # (TM, D) bf16 video rows
        qt = keys_ref[pl.ds(trow0, tm), :]            # (TM, D) bf16 text rows
        qs = jnp.concatenate([qv, qt], axis=0)        # (2TM, D) bf16

        # ---- single MXU matmul: contract last dims, f32 accumulation -------
        # result already equals logits / temperature (sqrt scale on both sides)
        s = jax.lax.dot_general(
            qs, keys_ref[...],
            dimension_numbers=(((1,), (1,)), ((), ())),
            preferred_element_type=jnp.float32)       # (2TM, 2B) f32

        s_v = s[:tm, :]                               # video-query rows
        s_t = s[tm:, :]                               # text-query rows
        intra_v = s_v[:, :batch]                      # v @ v.T / temp
        cross_v = s_v[:, batch:]                      # v @ t.T / temp
        cross_t = s_t[:, :batch]                      # t @ v.T / temp
        intra_t = s_t[:, batch:]                      # t @ t.T / temp

        # diagonal (self / positive-pair) mask for this row tile
        col = jax.lax.broadcasted_iota(jnp.int32, (tm, batch), 1)
        row = jax.lax.broadcasted_iota(jnp.int32, (tm, batch), 0) + vrow0
        is_diag = col == row

        # positive logits read from the same matmul entries used in the
        # denominator (self-consistent numerator/denominator).
        pos_v = jnp.sum(jnp.where(is_diag, cross_v, 0.0), axis=1, keepdims=True)
        pos_t = jnp.sum(jnp.where(is_diag, cross_t, 0.0), axis=1, keepdims=True)

        # intra-modal negatives: zero the self-similarity diagonal, weight by
        # negative_w (the zeroed entry still contributes exp(0)=1, as in the
        # reference where the masked value is concatenated into the softmax).
        neg_v = jnp.where(is_diag, 0.0, neg_w * intra_v)
        neg_t = jnp.where(is_diag, 0.0, neg_w * intra_t)

        # No max-subtraction: rows are L2-normalized so |logit| <= 1/temp and
        # exp() is safely inside f32 range; denom >= exp(0) = 1.
        denom_v = (jnp.sum(jnp.exp(cross_v), axis=1, keepdims=True)
                   + jnp.sum(jnp.exp(neg_v), axis=1, keepdims=True))
        denom_t = (jnp.sum(jnp.exp(cross_t), axis=1, keepdims=True)
                   + jnp.sum(jnp.exp(neg_t), axis=1, keepdims=True))

        # per-row (video loss + text loss); final mean/2 done by the wrapper
        o_ref[...] = (jnp.log(denom_v) - pos_v) + (jnp.log(denom_t) - pos_t)

    return kernel


def crossclr_only_intra_modality(video_features, text_features,
                                 temperature=TEMPERATURE,
                                 negative_weight=NEGATIVE_W):
    """Pallas implementation of CrossCLR_onlyIntraModality.forward."""
    B, D = video_features.shape
    assert text_features.shape == (B, D)
    TM = _row_tile(B)
    n_tiles = B // TM

    # Hoisted (one fused XLA pass): stack, L2-normalize rows in f32
    # (eps matches F.normalize(eps=1e-12)), fold sqrt(1/temperature) into both
    # sides so q.k already carries the 1/temperature scale, cast once to bf16.
    x = jnp.concatenate([video_features, text_features], axis=0).astype(jnp.float32)
    inv_norm = jax.lax.rsqrt(
        jnp.maximum(jnp.sum(x * x, axis=1, keepdims=True), 1e-24))
    keys = (x * (inv_norm * (1.0 / float(temperature)) ** 0.5)).astype(jnp.bfloat16)

    kernel = _make_kernel(B, TM, negative_weight)

    # VMEM budget: single-buffered bf16 keys + a handful of (2TM, 2B) f32
    # logits/exp temporaries per step, with headroom (32 MiB floor is the v7x
    # scoped default and ample for the demo shapes).
    keys_bytes = 2 * B * D * 2
    logits_bytes = 2 * TM * 2 * B * 4
    vmem_limit = int(min(96 * 1024 * 1024,
                         max(32 * 1024 * 1024, 2 * keys_bytes + 6 * logits_bytes)))

    row_losses = pl.pallas_call(
        kernel,
        out_shape=jax.ShapeDtypeStruct((B, 1), jnp.float32),
        grid_spec=pltpu.PrefetchScalarGridSpec(
            num_scalar_prefetch=0,
            grid=(n_tiles,),
            in_specs=[
                # whole stacked-key matrix resident in VMEM: one HBM->VMEM copy
                # for the entire kernel, single buffer (nothing to pipeline).
                pl.BlockSpec(memory_space=pltpu.MemorySpace.VMEM),
            ],
            out_specs=pl.BlockSpec((TM, 1), lambda i: (i, 0)),
        ),
        compiler_params=pltpu.CompilerParams(
            dimension_semantics=("parallel",),   # shard row tiles across v7x TCs
            vmem_limit_bytes=vmem_limit,
        ),
        cost_estimate=pl.CostEstimate(
            flops=8 * B * B * D,                 # (2B)x(2B)xD MACs x 2
            transcendentals=4 * B * B,           # exp count
            bytes_accessed=2 * B * D * 2 + 4 * B,  # bf16 keys in + f32 losses out
        ),
    )(keys)

    # (mean(loss_i) + mean(loss_t)) / 2  ==  sum(row_losses) / (2B)
    return jnp.sum(row_losses) * (1.0 / (2.0 * B))


def _reference(video_features, text_features,
               temperature=TEMPERATURE, negative_weight=NEGATIVE_W):
    """Plain-JAX f32 reference mirroring the PyTorch module (for verification)."""
    B = video_features.shape[0]
    v = video_features / jnp.maximum(
        jnp.linalg.norm(video_features, axis=1, keepdims=True), 1e-12)
    t = text_features / jnp.maximum(
        jnp.linalg.norm(text_features, axis=1, keepdims=True), 1e-12)
    l_vt = v @ t.T / temperature
    l_tv = t @ v.T / temperature
    l_vv = v @ v.T / temperature
    l_tt = t @ t.T / temperature
    pos_mask = 1.0 - jnp.eye(B)
    vid_logits = jnp.concatenate([l_vt, negative_weight * (l_vv * pos_mask)], axis=1)
    txt_logits = jnp.concatenate([l_tv, negative_weight * (l_tt * pos_mask)], axis=1)
    mask = jnp.concatenate([jnp.eye(B), jnp.zeros((B, B))], axis=1)
    loss_i = -jnp.log(jnp.sum(jax.nn.softmax(vid_logits, axis=1) * mask, axis=1))
    loss_t = -jnp.log(jnp.sum(jax.nn.softmax(txt_logits, axis=1) * mask, axis=1))
    return (loss_i.mean() + loss_t.mean()) / 2


if __name__ == "__main__":
    key = jax.random.PRNGKey(0)
    k1, k2 = jax.random.split(key)
    batch, embed_dim = 256, 128   # exercises a 2-step row-tiled grid (TM=128)
    video = jax.random.normal(k1, (batch, embed_dim), dtype=jnp.float32)
    text = jax.random.normal(k2, (batch, embed_dim), dtype=jnp.float32)

    loss_fn = jax.jit(crossclr_only_intra_modality)
    loss = jax.block_until_ready(loss_fn(video, text))

    ref = _reference(video, text)
    # tolerance relaxed vs pure-f32: bf16 MXU operands + temperature=0.03
    # amplify dot-product rounding (~1e-2 logit noise, ~1e-3 loss noise).
    assert jnp.allclose(loss, ref, rtol=2e-2, atol=2e-2), (loss, ref)
    print("KERNEL_OK")
</pallas_src>

<mosaic_0001>
module attributes {stable_mosaic.version = 11 : i64} {
  func.func @kernel(%arg0: i32, %arg1: memref<512x128xbf16, #tpu.memory_space<vmem>>, %arg2: memref<128x1xf32, #tpu.memory_space<vmem>>) attributes {dimension_semantics = [#tpu.dimension_semantics<parallel>], iteration_bounds = array<i64: 2>, scalar_prefetch = 0 : i64, scratch_operands = 0 : i64, tpu.core_type = #tpu.core_type<tc>, window_params = [{pipeline_mode = #tpu.pipeline_mode<synchronous>, transform_indices = @transform_0, window_bounds = array<i64: 512, 128>}, {transform_indices = @transform_1, window_bounds = array<i64: 128, 1>}]} {
    %c128_i32 = arith.constant 128 : i32
    %0 = arith.muli %arg0, %c128_i32 : i32
    %1 = tpu.assume_multiple %0, 128 : i32
    %c128_i32_0 = arith.constant 128 : i32
    %2 = arith.muli %arg0, %c128_i32_0 : i32
    %c256_i32 = arith.constant 256 : i32
    %3 = arith.addi %c256_i32, %2 : i32
    %4 = tpu.assume_multiple %3, 128 : i32
    %5 = arith.index_cast %1 : i32 to index
    %c0 = arith.constant 0 : index
    %6 = vector.load %arg1[%5, %c0] : memref<512x128xbf16, #tpu.memory_space<vmem>>, vector<128x128xbf16>
    %7 = arith.index_cast %4 : i32 to index
    %c0_1 = arith.constant 0 : index
    %8 = vector.load %arg1[%7, %c0_1] : memref<512x128xbf16, #tpu.memory_space<vmem>>, vector<128x128xbf16>
    %9 = tpu.concatenate %6, %8 in 0 : vector<128x128xbf16>, vector<128x128xbf16> -> vector<256x128xbf16>
    %c0_2 = arith.constant 0 : index
    %c0_3 = arith.constant 0 : index
    %10 = vector.load %arg1[%c0_2, %c0_3] : memref<512x128xbf16, #tpu.memory_space<vmem>>, vector<512x128xbf16>
    %cst = arith.constant dense<0.000000e+00> : vector<256x512xf32>
    %11 = tpu.matmul %9, %10, %cst {dimension_numbers = #tpu.dot_dimension_numbers<[1], [1], [0], [0], [0, 0, 1, 0], [], []>} : vector<256x128xbf16>, vector<512x128xbf16>, vector<256x512xf32> -> vector<256x512xf32>
    %12 = vector.extract_strided_slice %11 {offsets = [0, 0], sizes = [128, 512], strides = [1, 1]} : vector<256x512xf32> to vector<128x512xf32>
    %13 = vector.extract_strided_slice %11 {offsets = [128, 0], sizes = [128, 512], strides = [1, 1]} : vector<256x512xf32> to vector<128x512xf32>
    %14 = vector.extract_strided_slice %12 {offsets = [0, 0], sizes = [128, 256], strides = [1, 1]} : vector<128x512xf32> to vector<128x256xf32>
    %15 = vector.extract_strided_slice %12 {offsets = [0, 256], sizes = [128, 256], strides = [1, 1]} : vector<128x512xf32> to vector<128x256xf32>
    %16 = vector.extract_strided_slice %13 {offsets = [0, 0], sizes = [128, 256], strides = [1, 1]} : vector<128x512xf32> to vector<128x256xf32>
    %17 = vector.extract_strided_slice %13 {offsets = [0, 256], sizes = [128, 256], strides = [1, 1]} : vector<128x512xf32> to vector<128x256xf32>
    %18 = tpu.iota {dimensions = array<i32: 1>} : vector<128x256xi32>
    %19 = tpu.iota {dimensions = array<i32: 0>} : vector<128x256xi32>
    %20 = vector.broadcast %1 : i32 to vector<128x256xi32>
    %21 = arith.addi %19, %20 : vector<128x256xi32>
    %22 = arith.cmpi eq, %18, %21 : vector<128x256xi32>
    %cst_4 = arith.constant 0.000000e+00 : f32
    %23 = vector.broadcast %cst_4 : f32 to vector<128x256xf32>
    %24 = arith.select %22, %15, %23 : vector<128x256xi1>, vector<128x256xf32>
    %cst_5 = arith.constant dense<0.000000e+00> : vector<128xf32>
    %25 = vector.multi_reduction <add>, %24, %cst_5 [1] : vector<128x256xf32> to vector<128xf32>
    %26 = vector.shape_cast %25 : vector<128xf32> to vector<128x1xf32>
    %cst_6 = arith.constant 0.000000e+00 : f32
    %27 = vector.broadcast %cst_6 : f32 to vector<128x256xf32>
    %28 = arith.select %22, %16, %27 : vector<128x256xi1>, vector<128x256xf32>
    %cst_7 = arith.constant dense<0.000000e+00> : vector<128xf32>
    %29 = vector.multi_reduction <add>, %28, %cst_7 [1] : vector<128x256xf32> to vector<128xf32>
    %30 = vector.shape_cast %29 : vector<128xf32> to vector<128x1xf32>
    %cst_8 = arith.constant 8.000000e-01 : f32
    %31 = vector.broadcast %cst_8 : f32 to vector<128x256xf32>
    %32 = arith.mulf %31, %14 : vector<128x256xf32>
    %cst_9 = arith.constant 0.000000e+00 : f32
    %33 = vector.broadcast %cst_9 : f32 to vector<128x256xf32>
    %34 = arith.select %22, %33, %32 : vector<128x256xi1>, vector<128x256xf32>
    %cst_10 = arith.constant 8.000000e-01 : f32
    %35 = vector.broadcast %cst_10 : f32 to vector<128x256xf32>
    %36 = arith.mulf %35, %17 : vector<128x256xf32>
    %cst_11 = arith.constant 0.000000e+00 : f32
    %37 = vector.broadcast %cst_11 : f32 to vector<128x256xf32>
    %38 = arith.select %22, %37, %36 : vector<128x256xi1>, vector<128x256xf32>
    %39 = math.exp %15 : vector<128x256xf32>
    %cst_12 = arith.constant dense<0.000000e+00> : vector<128xf32>
    %40 = vector.multi_reduction <add>, %39, %cst_12 [1] : vector<128x256xf32> to vector<128xf32>
    %41 = vector.shape_cast %40 : vector<128xf32> to vector<128x1xf32>
    %42 = math.exp %34 : vector<128x256xf32>
    %cst_13 = arith.constant dense<0.000000e+00> : vector<128xf32>
    %43 = vector.multi_reduction <add>, %42, %cst_13 [1] : vector<128x256xf32> to vector<128xf32>
    %44 = vector.shape_cast %43 : vector<128xf32> to vector<128x1xf32>
    %45 = arith.addf %41, %44 : vector<128x1xf32>
    %46 = math.exp %16 : vector<128x256xf32>
    %cst_14 = arith.constant dense<0.000000e+00> : vector<128xf32>
    %47 = vector.multi_reduction <add>, %46, %cst_14 [1] : vector<128x256xf32> to vector<128xf32>
    %48 = vector.shape_cast %47 : vector<128xf32> to vector<128x1xf32>
    %49 = math.exp %38 : vector<128x256xf32>
    %cst_15 = arith.constant dense<0.000000e+00> : vector<128xf32>
    %50 = vector.multi_reduction <add>, %49, %cst_15 [1] : vector<128x256xf32> to vector<128xf32>
    %51 = vector.shape_cast %50 : vector<128xf32> to vector<128x1xf32>
    %52 = arith.addf %48, %51 : vector<128x1xf32>
    %53 = math.log %45 : vector<128x1xf32>
    %54 = arith.subf %53, %26 : vector<128x1xf32>
    %55 = math.log %52 : vector<128x1xf32>
    %56 = arith.subf %55, %30 : vector<128x1xf32>
    %57 = arith.addf %54, %56 : vector<128x1xf32>
    %c0_16 = arith.constant 0 : index
    %c0_17 = arith.constant 0 : index
    %58 = vector.load %arg2[%c0_16, %c0_17] : memref<128x1xf32, #tpu.memory_space<vmem>>, vector<128x1xf32>
    tpu.vector_store %arg2[%c0_16, %c0_17], %57 {strides = array<i32>} : memref<128x1xf32, #tpu.memory_space<vmem>>, vector<128x1xf32>,
    return
  }
  func.func @transform_0(%arg0: i32) -> (i32, i32) {
    %c0_i32 = arith.constant 0 : i32
    %c0_i32_0 = arith.constant 0 : i32
    %c0_i32_1 = arith.constant 0 : i32
    return %c0_i32, %c0_i32_0 : i32, i32
  }
  func.func @transform_1(%arg0: i32) -> (i32, i32) {
    %c0_i32 = arith.constant 0 : i32
    %c0_i32_0 = arith.constant 0 : i32
    return %arg0, %c0_i32 : i32, i32
  }
}

</mosaic_0001>

<llo_original>
// kernel: crossclr_only_intra_modality.1
$region0: #{crossclr_only_intra_modality.1}
  #allocation0 [shape = 'u32[]', space=smem, size = 0x4, offset = 0x4, fixed_abs, tag = 'smem constant byte address 0x4 - core index']
  #allocation1 [shape = 'u32[144,128]{1,0:T(1,128)}', space=vmem, size = 0x12000, scoped, tag = 'internal scratch']
  %s0 = inlined_call_operand.vmem [shape: bf16[512,128], index: 0, kind: input, shape index: {}]
  %s1 = inlined_call_operand.vmem [shape: f32[256,1], index: 1, kind: output, shape index: {}]
  %s2 = sld [smem:[#allocation0]]
  $region37: #{crossclr_only_intra_modality.1} parent=0
    _
  %s4 = ssub.s32 1, %s2
  %s5 = scalar_select 0, %s4, %s2
  loop: start=0, step=1, limit=4
  $region2: #{crossclr_only_intra_modality.1} parent=0 // loop_pre_header
    _
  $region3: #{crossclr_only_intra_modality.1} parent=0 // loop_header
    %s7 = sphi 0, %s11
    %p8 = scmp.ge.s32.totalorder %s7, 4
    %s15 = sphi 0, %s15
    %s17 = sphi 0, %s15
    %s18 = sphi 0, %s17
    %s32 = sphi 0, %s18
    %s38 = sphi 0, %s40
    %s41 = sphi 0, %s38
    %s42 = sphi 0, %s41
    %s58 = sphi 0, %s42
  $region4: #{crossclr_only_intra_modality.1} parent=0 // loop_header_branch
    %10 = sbr.rel (%p8) target = $region8
  $region5: #{crossclr_only_intra_modality.1} parent=0 // loop_body
    %s12 = ssub.s32 %s7, 1
    %s13 = ssub.s32 %s7, 2
    %s14 = sadd.s32 %s7, 1
    %s16 = sadd.s32 %s15, 1
    %p19 = scmp.eq.s32.totalorder %s7, 1
    %p20 = scmp.ne.s32.totalorder %s15, %s17
    %p21 = scmp.eq.s32.totalorder %s7, 0
    %p22 = por %p20, %p21
    %p23 = scmp.ne.s32.totalorder %s15, %s17
    %p24 = scmp.eq.s32.totalorder %s12, 1
    %p25 = por %p23, %p24
    %p26 = scmp.ne.s32.totalorder %s17, %s18
    %p27 = scmp.eq.s32.totalorder %s12, 0
    %p28 = por %p26, %p27
    %p29 = scmp.ne.s32.totalorder %s17, %s18
    %p30 = scmp.eq.s32.totalorder %s13, 1
    %p31 = por %p29, %p30
    %p33 = scmp.ne.s32.totalorder %s18, %s32
    %p34 = scmp.eq.s32.totalorder %s13, 0
    %p35 = por %p33, %p34
    %s36 = ssub.s32 %s7, %s14
    %p37 = scmp.eq.s32.totalorder %s36, 0
    %s39 = sadd.s32 %s38, 1
    %s40 = scalar_select %p37, %s38, %s39
    %p43 = pneg %p37
    %p44 = scmp.eq.s32.totalorder %s7, 1
    %p45 = por %p43, %p44
    %p46 = scmp.ne.s32.totalorder %s38, %s41
    %p47 = scmp.eq.s32.totalorder %s7, 0
    %p48 = por %p46, %p47
    %p49 = scmp.ne.s32.totalorder %s38, %s41
    %p50 = scmp.eq.s32.totalorder %s12, 1
    %p51 = por %p49, %p50
    %p52 = scmp.ne.s32.totalorder %s41, %s42
    %p53 = scmp.eq.s32.totalorder %s12, 0
    %p54 = por %p52, %p53
    %p55 = scmp.ne.s32.totalorder %s41, %s42
    %p56 = scmp.eq.s32.totalorder %s13, 1
    %p57 = por %p55, %p56
    %p59 = scmp.ne.s32.totalorder %s42, %s58
    %p60 = scmp.eq.s32.totalorder %s13, 0
    %p61 = por %p59, %p60
    %p62 = scmp.le.s32.totalorder 1, %s7
    %p63 = scmp.lt.s32.totalorder %s7, 3
    %p64 = pnand %p62, %p63
    %p65 = pneg %p64
    // Predicated region
    $region9: #{crossclr_only_intra_modality.1} parent=5 // pred_check
      _
    $region10: #{crossclr_only_intra_modality.1} parent=5 // pred_check_branch
      %67 = sbr.rel (%p64) target = $region12
    $region11: #{crossclr_only_intra_modality.1} parent=5 // pred_region
      %s68 = ssub.s32 %s7, 1
      // Predicated region
      $region13: #{crossclr_only_intra_modality.1} parent=11 // pred_check
        %p69 = pneg %p28
      $region14: #{crossclr_only_intra_modality.1} parent=11 // pred_check_branch
        %71 = sbr.rel (%p69) target = $region16
      $region15: #{crossclr_only_intra_modality.1} parent=11 // pred_region
        _
      $region16: #{crossclr_only_intra_modality.1} parent=11 // pred_fallthru
        _
    $region12: #{crossclr_only_intra_modality.1} parent=5 // pred_fallthru
      _
    %p72 = scmp.lt.s32.totalorder %s7, 2
    // Predicated region
    $region17: #{crossclr_only_intra_modality.1} parent=5 // pred_check
      %p73 = pneg %p72
    $region18: #{crossclr_only_intra_modality.1} parent=5 // pred_check_branch
      %75 = sbr.rel (%p73) target = $region20
    $region19: #{crossclr_only_intra_modality.1} parent=5 // pred_region
      _
    $region20: #{crossclr_only_intra_modality.1} parent=5 // pred_fallthru
      _
    %p76 = scmp.le.s32.totalorder 1, %s7
    %p77 = scmp.lt.s32.totalorder %s7, 3
    %p78 = pnand %p76, %p77
    %p79 = pneg %p78
    // Predicated region
    $region21: #{crossclr_only_intra_modality.1} parent=5 // pred_check
      _
    $region22: #{crossclr_only_intra_modality.1} parent=5 // pred_check_branch
      %81 = sbr.rel (%p78) target = $region24
    $region23: #{crossclr_only_intra_modality.1} parent=5 // pred_region
      %s82 = ssub.s32 %s7, 1
      %p83 = pneg %p28
      %p84 = pneg %p25
      %p85 = pneg %p54
      %p86 = pneg %p51
      %s87 = smul.u32 16, %s12
      %p88 = scmp.lt.s32.totalorder %s87, 31
      %s89 = scalar_select %p88, %s87, 31
      %s90 = smul.addr %s89, 8
      %s91 = scalar_lea.vmem %s1, %s90
      %s92 = smul.u32 16, %s12
      %p93 = scmp.lt.s32.totalorder %s92, 31
      %s94 = scalar_select %p93, %s92, 31
      %s95 = smul.addr %s94, 8
      %s96 = scalar_lea.vmem %s1, %s95
      %s97 = smul.u32 16, %s12
      %s99 = smul.u32 %s12, 128
      %s100 = sadd.s32 %s99, 256
      %s101 = sshra.s32 %s99, 3
      %s102 = sand.u32 %s99, 7
      %s103 = smul.addr %s101, 4
      %s104 = scalar_lea.vmem %s0, %s103
      %v105 = vld [vmem:[%s104] sm:$0xf]
      %v106 = vld [vmem:[%s104 + $0x4] sm:$0xf]
      %v107 = vld [vmem:[%s104 + $0x8] sm:$0xf]
      %v108 = vld [vmem:[%s104 + $0xc] sm:$0xf]
      %v109 = vld [vmem:[%s104 + $0x10] sm:$0xf]
      %v110 = vld [vmem:[%s104 + $0x14] sm:$0xf]
      %v111 = vld [vmem:[%s104 + $0x18] sm:$0xf]
      %v112 = vld [vmem:[%s104 + $0x1c] sm:$0xf]
      %v113 = vld [vmem:[%s104 + $0x20] sm:$0xf]
      %v114 = vld [vmem:[%s104 + $0x24] sm:$0xf]
      %v115 = vld [vmem:[%s104 + $0x28] sm:$0xf]
      %v116 = vld [vmem:[%s104 + $0x2c] sm:$0xf]
      %v117 = vld [vmem:[%s104 + $0x30] sm:$0xf]
      %v118 = vld [vmem:[%s104 + $0x34] sm:$0xf]
      %v119 = vld [vmem:[%s104 + $0x38] sm:$0xf]
      %v120 = vld [vmem:[%s104 + $0x3c] sm:$0xf]
      %s121 = sshra.s32 %s100, 3
      %s122 = sand.u32 %s100, 7
      %s123 = smul.addr %s121, 4
      %s124 = scalar_lea.vmem %s0, %s123
      %v125 = vld [vmem:[%s124] sm:$0xf]
      %v126 = vld [vmem:[%s124 + $0x4] sm:$0xf]
      %v127 = vld [vmem:[%s124 + $0x8] sm:$0xf]
      %v128 = vld [vmem:[%s124 + $0xc] sm:$0xf]
      %v129 = vld [vmem:[%s124 + $0x10] sm:$0xf]
      %v130 = vld [vmem:[%s124 + $0x14] sm:$0xf]
      %v131 = vld [vmem:[%s124 + $0x18] sm:$0xf]
      %v132 = vld [vmem:[%s124 + $0x1c] sm:$0xf]
      %v133 = vld [vmem:[%s124 + $0x20] sm:$0xf]
      %v134 = vld [vmem:[%s124 + $0x24] sm:$0xf]
      %v135 = vld [vmem:[%s124 + $0x28] sm:$0xf]
      %v136 = vld [vmem:[%s124 + $0x2c] sm:$0xf]
      %v137 = vld [vmem:[%s124 + $0x30] sm:$0xf]
      %v138 = vld [vmem:[%s124 + $0x34] sm:$0xf]
      %v139 = vld [vmem:[%s124 + $0x38] sm:$0xf]
      %v140 = vld [vmem:[%s124 + $0x3c] sm:$0xf]
      %v157 = vunpack.c.l.b16 %v105
      %v158 = vunpack.c.l.b16 %v106
      %v159 = vunpack.c.l.b16 %v107
      %v160 = vunpack.c.l.b16 %v108
      %v161 = vunpack.c.l.b16 %v109
      %v162 = vunpack.c.l.b16 %v110
      %v163 = vunpack.c.l.b16 %v111
      %v164 = vunpack.c.l.b16 %v112
      %v165 = vunpack.c.l.b16 %v113
      %v166 = vunpack.c.l.b16 %v114
      %v167 = vunpack.c.l.b16 %v115
      %v168 = vunpack.c.l.b16 %v116
      %v169 = vunpack.c.l.b16 %v117
      %v170 = vunpack.c.l.b16 %v118
      %v171 = vunpack.c.l.b16 %v119
      %v172 = vunpack.c.l.b16 %v120
      %v173 = vpack.c.b16 %v158, %v157
      %v174 = vpack.c.b16 %v160, %v159
      %v175 = vpack.c.b16 %v162, %v161
      %v176 = vpack.c.b16 %v164, %v163
      %v177 = vpack.c.b16 %v166, %v165
      %v178 = vpack.c.b16 %v168, %v167
      %v179 = vpack.c.b16 %v170, %v169
      %v180 = vpack.c.b16 %v172, %v171
      %v205 = vunpack.c.l.b16 %v125
      %v206 = vunpack.c.l.b16 %v126
      %v207 = vunpack.c.l.b16 %v127
      %v208 = vunpack.c.l.b16 %v128
      %v209 = vunpack.c.l.b16 %v129
      %v210 = vunpack.c.l.b16 %v130
      %v211 = vunpack.c.l.b16 %v131
      %v212 = vunpack.c.l.b16 %v132
      %v213 = vunpack.c.l.b16 %v133
      %v214 = vunpack.c.l.b16 %v134
      %v215 = vunpack.c.l.b16 %v135
      %v216 = vunpack.c.l.b16 %v136
      %v217 = vunpack.c.l.b16 %v137
      %v218 = vunpack.c.l.b16 %v138
      %v219 = vunpack.c.l.b16 %v139
      %v220 = vunpack.c.l.b16 %v140
      %v221 = vpack.c.b16 %v206, %v205
      %v222 = vpack.c.b16 %v208, %v207
      %v223 = vpack.c.b16 %v210, %v209
      %v224 = vpack.c.b16 %v212, %v211
      %v225 = vpack.c.b16 %v214, %v213
      %v226 = vpack.c.b16 %v216, %v215
      %v227 = vpack.c.b16 %v218, %v217
      %v228 = vpack.c.b16 %v220, %v219
      %v237 = vld [vmem:[%s0] sm:$0xf]
      %v238 = vld [vmem:[%s0 + $0x4] sm:$0xf]
      %v239 = vld [vmem:[%s0 + $0x8] sm:$0xf]
      %v240 = vld [vmem:[%s0 + $0xc] sm:$0xf]
      %v241 = vld [vmem:[%s0 + $0x10] sm:$0xf]
      %v242 = vld [vmem:[%s0 + $0x14] sm:$0xf]
      %v243 = vld [vmem:[%s0 + $0x18] sm:$0xf]
      %v244 = vld [vmem:[%s0 + $0x1c] sm:$0xf]
      %v245 = vld [vmem:[%s0 + $0x20] sm:$0xf]
      %v246 = vld [vmem:[%s0 + $0x24] sm:$0xf]
      %v247 = vld [vmem:[%s0 + $0x28] sm:$0xf]
      %v248 = vld [vmem:[%s0 + $0x2c] sm:$0xf]
      %v249 = vld [vmem:[%s0 + $0x30] sm:$0xf]
      %v250 = vld [vmem:[%s0 + $0x34] sm:$0xf]
      %v251 = vld [vmem:[%s0 + $0x38] sm:$0xf]
      %v252 = vld [vmem:[%s0 + $0x3c] sm:$0xf]
      %v253 = vld [vmem:[%s0 + $0x40] sm:$0xf]
      %v254 = vld [vmem:[%s0 + $0x44] sm:$0xf]
      %v255 = vld [vmem:[%s0 + $0x48] sm:$0xf]
      %v256 = vld [vmem:[%s0 + $0x4c] sm:$0xf]
      %v257 = vld [vmem:[%s0 + $0x50] sm:$0xf]
      %v258 = vld [vmem:[%s0 + $0x54] sm:$0xf]
      %v259 = vld [vmem:[%s0 + $0x58] sm:$0xf]
      %v260 = vld [vmem:[%s0 + $0x5c] sm:$0xf]
      %v261 = vld [vmem:[%s0 + $0x60] sm:$0xf]
      %v262 = vld [vmem:[%s0 + $0x64] sm:$0xf]
      %v263 = vld [vmem:[%s0 + $0x68] sm:$0xf]
      %v264 = vld [vmem:[%s0 + $0x6c] sm:$0xf]
      %v265 = vld [vmem:[%s0 + $0x70] sm:$0xf]
      %v266 = vld [vmem:[%s0 + $0x74] sm:$0xf]
      %v267 = vld [vmem:[%s0 + $0x78] sm:$0xf]
      %v268 = vld [vmem:[%s0 + $0x7c] sm:$0xf]
      %v269 = vld [vmem:[%s0 + $0x80] sm:$0xf]
      %v270 = vld [vmem:[%s0 + $0x84] sm:$0xf]
      %v271 = vld [vmem:[%s0 + $0x88] sm:$0xf]
      %v272 = vld [vmem:[%s0 + $0x8c] sm:$0xf]
      %v273 = vld [vmem:[%s0 + $0x90] sm:$0xf]
      %v274 = vld [vmem:[%s0 + $0x94] sm:$0xf]
      %v275 = vld [vmem:[%s0 + $0x98] sm:$0xf]
      %v276 = vld [vmem:[%s0 + $0x9c] sm:$0xf]
      %v277 = vld [vmem:[%s0 + $0xa0] sm:$0xf]
      %v278 = vld [vmem:[%s0 + $0xa4] sm:$0xf]
      %v279 = vld [vmem:[%s0 + $0xa8] sm:$0xf]
      %v280 = vld [vmem:[%s0 + $0xac] sm:$0xf]
      %v281 = vld [vmem:[%s0 + $0xb0] sm:$0xf]
      %v282 = vld [vmem:[%s0 + $0xb4] sm:$0xf]
      %v283 = vld [vmem:[%s0 + $0xb8] sm:$0xf]
      %v284 = vld [vmem:[%s0 + $0xbc] sm:$0xf]
      %v285 = vld [vmem:[%s0 + $0xc0] sm:$0xf]
      %v286 = vld [vmem:[%s0 + $0xc4] sm:$0xf]
      %v287 = vld [vmem:[%s0 + $0xc8] sm:$0xf]
      %v288 = vld [vmem:[%s0 + $0xcc] sm:$0xf]
      %v289 = vld [vmem:[%s0 + $0xd0] sm:$0xf]
      %v290 = vld [vmem:[%s0 + $0xd4] sm:$0xf]
      %v291 = vld [vmem:[%s0 + $0xd8] sm:$0xf]
      %v292 = vld [vmem:[%s0 + $0xdc] sm:$0xf]
      %v293 = vld [vmem:[%s0 + $0xe0] sm:$0xf]
      %v294 = vld [vmem:[%s0 + $0xe4] sm:$0xf]
      %v295 = vld [vmem:[%s0 + $0xe8] sm:$0xf]
      %v296 = vld [vmem:[%s0 + $0xec] sm:$0xf]
      %v297 = vld [vmem:[%s0 + $0xf0] sm:$0xf]
      %v298 = vld [vmem:[%s0 + $0xf4] sm:$0xf]
      %v299 = vld [vmem:[%s0 + $0xf8] sm:$0xf]
      %v300 = vld [vmem:[%s0 + $0xfc] sm:$0xf]
      %v365 = vunpack.c.l.b16 %v237
      %v366 = vunpack.c.l.b16 %v238
      %v367 = vunpack.c.l.b16 %v239
      %v368 = vunpack.c.l.b16 %v240
      %v369 = vunpack.c.l.b16 %v241
      %v370 = vunpack.c.l.b16 %v242
      %v371 = vunpack.c.l.b16 %v243
      %v372 = vunpack.c.l.b16 %v244
      %v373 = vunpack.c.l.b16 %v245
      %v374 = vunpack.c.l.b16 %v246
      %v375 = vunpack.c.l.b16 %v247
      %v376 = vunpack.c.l.b16 %v248
      %v377 = vunpack.c.l.b16 %v249
      %v378 = vunpack.c.l.b16 %v250
      %v379 = vunpack.c.l.b16 %v251
      %v380 = vunpack.c.l.b16 %v252
      %v381 = vunpack.c.l.b16 %v253
      %v382 = vunpack.c.l.b16 %v254
      %v383 = vunpack.c.l.b16 %v255
      %v384 = vunpack.c.l.b16 %v256
      %v385 = vunpack.c.l.b16 %v257
      %v386 = vunpack.c.l.b16 %v258
      %v387 = vunpack.c.l.b16 %v259
      %v388 = vunpack.c.l.b16 %v260
      %v389 = vunpack.c.l.b16 %v261
      %v390 = vunpack.c.l.b16 %v262
      %v391 = vunpack.c.l.b16 %v263
      %v392 = vunpack.c.l.b16 %v264
      %v393 = vunpack.c.l.b16 %v265
      %v394 = vunpack.c.l.b16 %v266
      %v395 = vunpack.c.l.b16 %v267
      %v396 = vunpack.c.l.b16 %v268
      %v397 = vunpack.c.l.b16 %v269
      %v398 = vunpack.c.l.b16 %v270
      %v399 = vunpack.c.l.b16 %v271
      %v400 = vunpack.c.l.b16 %v272
      %v401 = vunpack.c.l.b16 %v273
      %v402 = vunpack.c.l.b16 %v274
      %v403 = vunpack.c.l.b16 %v275
      %v404 = vunpack.c.l.b16 %v276
      %v405 = vunpack.c.l.b16 %v277
      %v406 = vunpack.c.l.b16 %v278
      %v407 = vunpack.c.l.b16 %v279
      %v408 = vunpack.c.l.b16 %v280
      %v409 = vunpack.c.l.b16 %v281
      %v410 = vunpack.c.l.b16 %v282
      %v411 = vunpack.c.l.b16 %v283
      %v412 = vunpack.c.l.b16 %v284
      %v413 = vunpack.c.l.b16 %v285
      %v414 = vunpack.c.l.b16 %v286
      %v415 = vunpack.c.l.b16 %v287
      %v416 = vunpack.c.l.b16 %v288
      %v417 = vunpack.c.l.b16 %v289
      %v418 = vunpack.c.l.b16 %v290
      %v419 = vunpack.c.l.b16 %v291
      %v420 = vunpack.c.l.b16 %v292
      %v421 = vunpack.c.l.b16 %v293
      %v422 = vunpack.c.l.b16 %v294
      %v423 = vunpack.c.l.b16 %v295
      %v424 = vunpack.c.l.b16 %v296
      %v425 = vunpack.c.l.b16 %v297
      %v426 = vunpack.c.l.b16 %v298
      %v427 = vunpack.c.l.b16 %v299
      %v428 = vunpack.c.l.b16 %v300
      %v429 = vpack.c.b16 %v366, %v365
      %v430 = vpack.c.b16 %v368, %v367
      %v431 = vpack.c.b16 %v370, %v369
      %v432 = vpack.c.b16 %v372, %v371
      %v433 = vpack.c.b16 %v374, %v373
      %v434 = vpack.c.b16 %v376, %v375
      %v435 = vpack.c.b16 %v378, %v377
      %v436 = vpack.c.b16 %v380, %v379
      %v437 = vpack.c.b16 %v382, %v381
      %v438 = vpack.c.b16 %v384, %v383
      %v439 = vpack.c.b16 %v386, %v385
      %v440 = vpack.c.b16 %v388, %v387
      %v441 = vpack.c.b16 %v390, %v389
      %v442 = vpack.c.b16 %v392, %v391
      %v443 = vpack.c.b16 %v394, %v393
      %v444 = vpack.c.b16 %v396, %v395
      %v445 = vpack.c.b16 %v398, %v397
      %v446 = vpack.c.b16 %v400, %v399
      %v447 = vpack.c.b16 %v402, %v401
      %v448 = vpack.c.b16 %v404, %v403
      %v449 = vpack.c.b16 %v406, %v405
      %v450 = vpack.c.b16 %v408, %v407
      %v451 = vpack.c.b16 %v410, %v409
      %v452 = vpack.c.b16 %v412, %v411
      %v453 = vpack.c.b16 %v414, %v413
      %v454 = vpack.c.b16 %v416, %v415
      %v455 = vpack.c.b16 %v418, %v417
      %v456 = vpack.c.b16 %v420, %v419
      %v457 = vpack.c.b16 %v422, %v421
      %v458 = vpack.c.b16 %v424, %v423
      %v459 = vpack.c.b16 %v426, %v425
      %v460 = vpack.c.b16 %v428, %v427
      %493 = vmatprep.subr.bf16.mxu0 0
      %494 = vmatpush1.bf16.xpose.msra.mxu0 %v429
      %495 = vmatprep.subr.bf16.mxu0 0
      %496 = vmatpush1.bf16.xpose.msra.mxu0 %v430
      %497 = vmatprep.subr.bf16.mxu0 0
      %498 = vmatpush1.bf16.xpose.msra.mxu0 %v431
      %499 = vmatprep.subr.bf16.mxu0 0
      %500 = vmatpush1.bf16.xpose.msra.mxu0 %v432
      %501 = vmatprep.subr.bf16.mxu0 0
      %502 = vmatpush1.bf16.xpose.msra.mxu0 %v433
      %503 = vmatprep.subr.bf16.mxu0 0
      %504 = vmatpush1.bf16.xpose.msra.mxu0 %v434
      %505 = vmatprep.subr.bf16.mxu0 0
      %506 = vmatpush1.bf16.xpose.msra.mxu0 %v435
      %507 = vmatprep.subr.bf16.mxu0 0
      %508 = vmatpush1.bf16.xpose.msra.mxu0 %v436
      %509 = vmatprep.subr.bf16.mxu0 0
      %510 = vmatpush1.bf16.xpose.msra.mxu0 %v437
      %511 = vmatprep.subr.bf16.mxu0 0
      %512 = vmatpush1.bf16.xpose.msra.mxu0 %v438
      %513 = vmatprep.subr.bf16.mxu0 0
      %514 = vmatpush1.bf16.xpose.msra.mxu0 %v439
      %515 = vmatprep.subr.bf16.mxu0 0
      %516 = vmatpush1.bf16.xpose.msra.mxu0 %v440
      %517 = vmatprep.subr.bf16.mxu0 0
      %518 = vmatpush1.bf16.xpose.msra.mxu0 %v441
      %519 = vmatprep.subr.bf16.mxu0 0
      %520 = vmatpush1.bf16.xpose.msra.mxu0 %v442
      %521 = vmatprep.subr.bf16.mxu0 0
      %522 = vmatpush1.bf16.xpose.msra.mxu0 %v443
      %523 = vmatprep.subr.bf16.mxu0 0
      %524 = vmatpush1.bf16.xpose.msra.mxu0 %v444
      %525 = vmatprep.mubr.bf16.mxu0 0
      %526 = vmatmul.mubr.bf16.gmra.mrb[0].mxu0 %v173
      %v527 = vpop.f32.mrb[0].mxu0
      %v528 = vadd.f32 0.0, %v527
      %v529 = vpop.f32.mrb[0].mxu0
      %v530 = vadd.f32 0.0, %v529
      %v531 = vpop.f32.mrb[0].mxu0
      %v532 = vadd.f32 0.0, %v531
      %v533 = vpop.f32.mrb[0].mxu0
      %v534 = vadd.f32 0.0, %v533
      %535 = vmatprep.mubr.bf16.mxu0 0
      %536 = vmatmul.mubr.bf16.gmra.mrb[0].mxu0 %v174
      %v537 = vpop.f32.mrb[0].mxu0
      %v538 = vadd.f32 0.0, %v537
      %v539 = vpop.f32.mrb[0].mxu0
      %v540 = vadd.f32 0.0, %v539
      %v541 = vpop.f32.mrb[0].mxu0
      %v542 = vadd.f32 0.0, %v541
      %v543 = vpop.f32.mrb[0].mxu0
      %v544 = vadd.f32 0.0, %v543
      %545 = vmatprep.mubr.bf16.mxu0 0
      %546 = vmatmul.mubr.bf16.gmra.mrb[0].mxu0 %v175
      %v547 = vpop.f32.mrb[0].mxu0
      %v548 = vadd.f32 0.0, %v547
      %v549 = vpop.f32.mrb[0].mxu0
      %v550 = vadd.f32 0.0, %v549
      %v551 = vpop.f32.mrb[0].mxu0
      %v552 = vadd.f32 0.0, %v551
      %v553 = vpop.f32.mrb[0].mxu0
      %v554 = vadd.f32 0.0, %v553
      %555 = vmatprep.mubr.bf16.mxu0 0
      %556 = vmatmul.mubr.bf16.gmra.mrb[0].mxu0 %v176
      %v557 = vpop.f32.mrb[0].mxu0
      %v558 = vadd.f32 0.0, %v557
      %v559 = vpop.f32.mrb[0].mxu0
      %v560 = vadd.f32 0.0, %v559
      %v561 = vpop.f32.mrb[0].mxu0
      %v562 = vadd.f32 0.0, %v561
      %v563 = vpop.f32.mrb[0].mxu0
      %v564 = vadd.f32 0.0, %v563
      %565 = vmatprep.mubr.bf16.mxu0 0
      %566 = vmatmul.mubr.bf16.gmra.mrb[0].mxu0 %v177
      %v567 = vpop.f32.mrb[0].mxu0
      %v568 = vadd.f32 0.0, %v567
      %v569 = vpop.f32.mrb[0].mxu0
      %v570 = vadd.f32 0.0, %v569
      %v571 = vpop.f32.mrb[0].mxu0
      %v572 = vadd.f32 0.0, %v571
      %v573 = vpop.f32.mrb[0].mxu0
      %v574 = vadd.f32 0.0, %v573
      %575 = vmatprep.mubr.bf16.mxu0 0
      %576 = vmatmul.mubr.bf16.gmra.mrb[0].mxu0 %v178
      %v577 = vpop.f32.mrb[0].mxu0
      %v578 = vadd.f32 0.0, %v577
      %v579 = vpop.f32.mrb[0].mxu0
      %v580 = vadd.f32 0.0, %v579
      %v581 = vpop.f32.mrb[0].mxu0
      %v582 = vadd.f32 0.0, %v581
      %v583 = vpop.f32.mrb[0].mxu0
      %v584 = vadd.f32 0.0, %v583
      %585 = vmatprep.mubr.bf16.mxu0 0
      %586 = vmatmul.mubr.bf16.gmra.mrb[0].mxu0 %v179
      %v587 = vpop.f32.mrb[0].mxu0
      %v588 = vadd.f32 0.0, %v587
      %v589 = vpop.f32.mrb[0].mxu0
      %v590 = vadd.f32 0.0, %v589
      %v591 = vpop.f32.mrb[0].mxu0
      %v592 = vadd.f32 0.0, %v591
      %v593 = vpop.f32.mrb[0].mxu0
      %v594 = vadd.f32 0.0, %v593
      %595 = vmatprep.mubr.bf16.mxu0 0
      %596 = vmatmul.mubr.bf16.gmra.mrb[0].mxu0 %v180
      %v597 = vpop.f32.mrb[0].mxu0
      %v598 = vadd.f32 0.0, %v597
      %v599 = vpop.f32.mrb[0].mxu0
      %v600 = vadd.f32 0.0, %v599
      %v601 = vpop.f32.mrb[0].mxu0
      %v602 = vadd.f32 0.0, %v601
      %v603 = vpop.f32.mrb[0].mxu0
      %v604 = vadd.f32 0.0, %v603
      %605 = vmatprep.mubr.bf16.mxu0 0
      %606 = vmatmul.mubr.bf16.gmra.mrb[0].mxu0 %v221
      %v607 = vpop.f32.mrb[0].mxu0
      %v608 = vadd.f32 0.0, %v607
      %v609 = vpop.f32.mrb[0].mxu0
      %v610 = vadd.f32 0.0, %v609
      %v611 = vpop.f32.mrb[0].mxu0
      %v612 = vadd.f32 0.0, %v611
      %v613 = vpop.f32.mrb[0].mxu0
      %v614 = vadd.f32 0.0, %v613
      %615 = vmatprep.mubr.bf16.mxu0 0
      %616 = vmatmul.mubr.bf16.gmra.mrb[0].mxu0 %v222
      %v617 = vpop.f32.mrb[0].mxu0
      %v618 = vadd.f32 0.0, %v617
      %v619 = vpop.f32.mrb[0].mxu0
      %v620 = vadd.f32 0.0, %v619
      %v621 = vpop.f32.mrb[0].mxu0
      %v622 = vadd.f32 0.0, %v621
      %v623 = vpop.f32.mrb[0].mxu0
      %v624 = vadd.f32 0.0, %v623
      %625 = vmatprep.mubr.bf16.mxu0 0
      %626 = vmatmul.mubr.bf16.gmra.mrb[0].mxu0 %v223
      %v627 = vpop.f32.mrb[0].mxu0
      %v628 = vadd.f32 0.0, %v627
      %v629 = vpop.f32.mrb[0].mxu0
      %v630 = vadd.f32 0.0, %v629
      %v631 = vpop.f32.mrb[0].mxu0
      %v632 = vadd.f32 0.0, %v631
      %v633 = vpop.f32.mrb[0].mxu0
      %v634 = vadd.f32 0.0, %v633
      %635 = vmatprep.mubr.bf16.mxu0 0
      %636 = vmatmul.mubr.bf16.gmra.mrb[0].mxu0 %v224
      %v637 = vpop.f32.mrb[0].mxu0
      %v638 = vadd.f32 0.0, %v637
      %v639 = vpop.f32.mrb[0].mxu0
      %v640 = vadd.f32 0.0, %v639
      %v641 = vpop.f32.mrb[0].mxu0
      %v642 = vadd.f32 0.0, %v641
      %v643 = vpop.f32.mrb[0].mxu0
      %v644 = vadd.f32 0.0, %v643
      %645 = vmatprep.mubr.bf16.mxu0 0
      %646 = vmatmul.mubr.bf16.gmra.mrb[0].mxu0 %v225
      %v647 = vpop.f32.mrb[0].mxu0
      %v648 = vadd.f32 0.0, %v647
      %v649 = vpop.f32.mrb[0].mxu0
      %v650 = vadd.f32 0.0, %v649
      %v651 = vpop.f32.mrb[0].mxu0
      %v652 = vadd.f32 0.0, %v651
      %v653 = vpop.f32.mrb[0].mxu0
      %v654 = vadd.f32 0.0, %v653
      %655 = vmatprep.mubr.bf16.mxu0 0
      %656 = vmatmul.mubr.bf16.gmra.mrb[0].mxu0 %v226
      %v657 = vpop.f32.mrb[0].mxu0
      %v658 = vadd.f32 0.0, %v657
      %v659 = vpop.f32.mrb[0].mxu0
      %v660 = vadd.f32 0.0, %v659
      %v661 = vpop.f32.mrb[0].mxu0
      %v662 = vadd.f32 0.0, %v661
      %v663 = vpop.f32.mrb[0].mxu0
      %v664 = vadd.f32 0.0, %v663
      %665 = vmatprep.mubr.bf16.mxu0 0
      %666 = vmatmul.mubr.bf16.gmra.mrb[0].mxu0 %v227
      %v667 = vpop.f32.mrb[0].mxu0
      %v668 = vadd.f32 0.0, %v667
      %v669 = vpop.f32.mrb[0].mxu0
      %v670 = vadd.f32 0.0, %v669
      %v671 = vpop.f32.mrb[0].mxu0
      %v672 = vadd.f32 0.0, %v671
      %v673 = vpop.f32.mrb[0].mxu0
      %v674 = vadd.f32 0.0, %v673
      %675 = vmatprep.mubr.bf16.mxu0 0
      %676 = vmatmul.mubr.bf16.gmra.mrb[0].mxu0 %v228
      %v677 = vpop.f32.mrb[0].mxu0
      %v678 = vadd.f32 0.0, %v677
      %v679 = vpop.f32.mrb[0].mxu0
      %v680 = vadd.f32 0.0, %v679
      %v681 = vpop.f32.mrb[0].mxu0
      %v682 = vadd.f32 0.0, %v681
      %v683 = vpop.f32.mrb[0].mxu0
      %v684 = vadd.f32 0.0, %v683
      %685 = vdwg.mxu0
      %686 = vmatprep.subr.bf16.mxu0 0
      %687 = vmatpush1.bf16.xpose.msra.mxu0 %v445
      %688 = vmatprep.subr.bf16.mxu0 0
      %689 = vmatpush1.bf16.xpose.msra.mxu0 %v446
      %690 = vmatprep.subr.bf16.mxu0 0
      %691 = vmatpush1.bf16.xpose.msra.mxu0 %v447
      %692 = vmatprep.subr.bf16.mxu0 0
      %693 = vmatpush1.bf16.xpose.msra.mxu0 %v448
      %694 = vmatprep.subr.bf16.mxu0 0
      %695 = vmatpush1.bf16.xpose.msra.mxu0 %v449
      %696 = vmatprep.subr.bf16.mxu0 0
      %697 = vmatpush1.bf16.xpose.msra.mxu0 %v450
      %698 = vmatprep.subr.bf16.mxu0 0
      %699 = vmatpush1.bf16.xpose.msra.mxu0 %v451
      %700 = vmatprep.subr.bf16.mxu0 0
      %701 = vmatpush1.bf16.xpose.msra.mxu0 %v452
      %702 = vmatprep.subr.bf16.mxu0 0
      %703 = vmatpush1.bf16.xpose.msra.mxu0 %v453
      %704 = vmatprep.subr.bf16.mxu0 0
      %705 = vmatpush1.bf16.xpose.msra.mxu0 %v454
      %706 = vmatprep.subr.bf16.mxu0 0
      %707 = vmatpush1.bf16.xpose.msra.mxu0 %v455
      %708 = vmatprep.subr.bf16.mxu0 0
      %709 = vmatpush1.bf16.xpose.msra.mxu0 %v456
      %710 = vmatprep.subr.bf16.mxu0 0
      %711 = vmatpush1.bf16.xpose.msra.mxu0 %v457
      %712 = vmatprep.subr.bf16.mxu0 0
      %713 = vmatpush1.bf16.xpose.msra.mxu0 %v458
      %714 = vmatprep.subr.bf16.mxu0 0
      %715 = vmatpush1.bf16.xpose.msra.mxu0 %v459
      %716 = vmatprep.subr.bf16.mxu0 0
      %717 = vmatpush1.bf16.xpose.msra.mxu0 %v460
      %718 = vmatprep.mubr.bf16.mxu0 0
      %719 = vmatmul.mubr.bf16.gmra.mrb[0].mxu0 %v173
      %v720 = vpop.f32.mrb[0].mxu0
      %v721 = vadd.f32 0.0, %v720
      %v722 = vpop.f32.mrb[0].mxu0
      %v723 = vadd.f32 0.0, %v722
      %v724 = vpop.f32.mrb[0].mxu0
      %v725 = vadd.f32 0.0, %v724
      %v726 = vpop.f32.mrb[0].mxu0
      %v727 = vadd.f32 0.0, %v726
      %728 = vmatprep.mubr.bf16.mxu0 0
      %729 = vmatmul.mubr.bf16.gmra.mrb[0].mxu0 %v174
      %v730 = vpop.f32.mrb[0].mxu0
      %v731 = vadd.f32 0.0, %v730
      %v732 = vpop.f32.mrb[0].mxu0
      %v733 = vadd.f32 0.0, %v732
      %v734 = vpop.f32.mrb[0].mxu0
      %v735 = vadd.f32 0.0, %v734
      %v736 = vpop.f32.mrb[0].mxu0
      %v737 = vadd.f32 0.0, %v736
      %738 = vmatprep.mubr.bf16.mxu0 0
      %739 = vmatmul.mubr.bf16.gmra.mrb[0].mxu0 %v175
      %v740 = vpop.f32.mrb[0].mxu0
      %v741 = vadd.f32 0.0, %v740
      %v742 = vpop.f32.mrb[0].mxu0
      %v743 = vadd.f32 0.0, %v742
      %v744 = vpop.f32.mrb[0].mxu0
      %v745 = vadd.f32 0.0, %v744
      %v746 = vpop.f32.mrb[0].mxu0
      %v747 = vadd.f32 0.0, %v746
      %748 = vmatprep.mubr.bf16.mxu0 0
      %749 = vmatmul.mubr.bf16.gmra.mrb[0].mxu0 %v176
      %v750 = vpop.f32.mrb[0].mxu0
      %v751 = vadd.f32 0.0, %v750
      %v752 = vpop.f32.mrb[0].mxu0
      %v753 = vadd.f32 0.0, %v752
      %v754 = vpop.f32.mrb[0].mxu0
      %v755 = vadd.f32 0.0, %v754
      %v756 = vpop.f32.mrb[0].mxu0
      %v757 = vadd.f32 0.0, %v756
      %758 = vmatprep.mubr.bf16.mxu0 0
      %759 = vmatmul.mubr.bf16.gmra.mrb[0].mxu0 %v177
      %v760 = vpop.f32.mrb[0].mxu0
      %v761 = vadd.f32 0.0, %v760
      %v762 = vpop.f32.mrb[0].mxu0
      %v763 = vadd.f32 0.0, %v762
      %v764 = vpop.f32.mrb[0].mxu0
      %v765 = vadd.f32 0.0, %v764
      %v766 = vpop.f32.mrb[0].mxu0
      %v767 = vadd.f32 0.0, %v766
      %768 = vmatprep.mubr.bf16.mxu0 0
      %769 = vmatmul.mubr.bf16.gmra.mrb[0].mxu0 %v178
      %v770 = vpop.f32.mrb[0].mxu0
      %v771 = vadd.f32 0.0, %v770
      %v772 = vpop.f32.mrb[0].mxu0
      %v773 = vadd.f32 0.0, %v772
      %v774 = vpop.f32.mrb[0].mxu0
      %v775 = vadd.f32 0.0, %v774
      %v776 = vpop.f32.mrb[0].mxu0
      %v777 = vadd.f32 0.0, %v776
      %778 = vmatprep.mubr.bf16.mxu0 0
      %779 = vmatmul.mubr.bf16.gmra.mrb[0].mxu0 %v179
      %v780 = vpop.f32.mrb[0].mxu0
      %v781 = vadd.f32 0.0, %v780
      %v782 = vpop.f32.mrb[0].mxu0
      %v783 = vadd.f32 0.0, %v782
      %v784 = vpop.f32.mrb[0].mxu0
      %v785 = vadd.f32 0.0, %v784
      %v786 = vpop.f32.mrb[0].mxu0
      %v787 = vadd.f32 0.0, %v786
      %788 = vmatprep.mubr.bf16.mxu0 0
      %789 = vmatmul.mubr.bf16.gmra.mrb[0].mxu0 %v180
      %v790 = vpop.f32.mrb[0].mxu0
      %v791 = vadd.f32 0.0, %v790
      %v792 = vpop.f32.mrb[0].mxu0
      %v793 = vadd.f32 0.0, %v792
      %v794 = vpop.f32.mrb[0].mxu0
      %v795 = vadd.f32 0.0, %v794
      %v796 = vpop.f32.mrb[0].mxu0
      %v797 = vadd.f32 0.0, %v796
      %798 = vmatprep.mubr.bf16.mxu0 0
      %799 = vmatmul.mubr.bf16.gmra.mrb[0].mxu0 %v221
      %v800 = vpop.f32.mrb[0].mxu0
      %v801 = vadd.f32 0.0, %v800
      %v802 = vpop.f32.mrb[0].mxu0
      %v803 = vadd.f32 0.0, %v802
      %v804 = vpop.f32.mrb[0].mxu0
      %v805 = vadd.f32 0.0, %v804
      %v806 = vpop.f32.mrb[0].mxu0
      %v807 = vadd.f32 0.0, %v806
      %808 = vmatprep.mubr.bf16.mxu0 0
      %809 = vmatmul.mubr.bf16.gmra.mrb[0].mxu0 %v222
      %v810 = vpop.f32.mrb[0].mxu0
      %v811 = vadd.f32 0.0, %v810
      %v812 = vpop.f32.mrb[0].mxu0
      %v813 = vadd.f32 0.0, %v812
      %v814 = vpop.f32.mrb[0].mxu0
      %v815 = vadd.f32 0.0, %v814
      %v816 = vpop.f32.mrb[0].mxu0
      %v817 = vadd.f32 0.0, %v816
      %818 = vmatprep.mubr.bf16.mxu0 0
      %819 = vmatmul.mubr.bf16.gmra.mrb[0].mxu0 %v223
      %v820 = vpop.f32.mrb[0].mxu0
      %v821 = vadd.f32 0.0, %v820
      %v822 = vpop.f32.mrb[0].mxu0
      %v823 = vadd.f32 0.0, %v822
      %v824 = vpop.f32.mrb[0].mxu0
      %v825 = vadd.f32 0.0, %v824
      %v826 = vpop.f32.mrb[0].mxu0
      %v827 = vadd.f32 0.0, %v826
      %828 = vmatprep.mubr.bf16.mxu0 0
      %829 = vmatmul.mubr.bf16.gmra.mrb[0].mxu0 %v224
      %v830 = vpop.f32.mrb[0].mxu0
      %v831 = vadd.f32 0.0, %v830
      %v832 = vpop.f32.mrb[0].mxu0
      %v833 = vadd.f32 0.0, %v832
      %v834 = vpop.f32.mrb[0].mxu0
      %v835 = vadd.f32 0.0, %v834
      %v836 = vpop.f32.mrb[0].mxu0
      %v837 = vadd.f32 0.0, %v836
      %838 = vmatprep.mubr.bf16.mxu0 0
      %839 = vmatmul.mubr.bf16.gmra.mrb[0].mxu0 %v225
      %v840 = vpop.f32.mrb[0].mxu0
      %v841 = vadd.f32 0.0, %v840
      %v842 = vpop.f32.mrb[0].mxu0
      %v843 = vadd.f32 0.0, %v842
      %v844 = vpop.f32.mrb[0].mxu0
      %v845 = vadd.f32 0.0, %v844
      %v846 = vpop.f32.mrb[0].mxu0
      %v847 = vadd.f32 0.0, %v846
      %848 = vmatprep.mubr.bf16.mxu0 0
      %849 = vmatmul.mubr.bf16.gmra.mrb[0].mxu0 %v226
      %v850 = vpop.f32.mrb[0].mxu0
      %v851 = vadd.f32 0.0, %v850
      %v852 = vpop.f32.mrb[0].mxu0
      %v853 = vadd.f32 0.0, %v852
      %v854 = vpop.f32.mrb[0].mxu0
      %v855 = vadd.f32 0.0, %v854
      %v856 = vpop.f32.mrb[0].mxu0
      %v857 = vadd.f32 0.0, %v856
      %858 = vmatprep.mubr.bf16.mxu0 0
      %859 = vmatmul.mubr.bf16.gmra.mrb[0].mxu0 %v227
      %v860 = vpop.f32.mrb[0].mxu0
      %v861 = vadd.f32 0.0, %v860
      %v862 = vpop.f32.mrb[0].mxu0
      %v863 = vadd.f32 0.0, %v862
      %v864 = vpop.f32.mrb[0].mxu0
      %v865 = vadd.f32 0.0, %v864
      %v866 = vpop.f32.mrb[0].mxu0
      %v867 = vadd.f32 0.0, %v866
      %868 = vmatprep.mubr.bf16.mxu0 0
      %869 = vmatmul.mubr.bf16.gmra.mrb[0].mxu0 %v228
      %v870 = vpop.f32.mrb[0].mxu0
      %v871 = vadd.f32 0.0, %v870
      %v872 = vpop.f32.mrb[0].mxu0
      %v873 = vadd.f32 0.0, %v872
      %v874 = vpop.f32.mrb[0].mxu0
      %v875 = vadd.f32 0.0, %v874
      %v876 = vpop.f32.mrb[0].mxu0
      %v877 = vadd.f32 0.0, %v876
      %878 = vdwg.mxu0
      %v879 = vlaneseq
      %v880 = vand.u32 %v879, 127
      %v881 = vadd.s32 %v880, 128
      %v882 = vlaneseq
      %v883 = vshrl.u32 %v882, 7
      %v884 = vadd.s32 %v883, 8
      %v885 = vadd.s32 %v883, 16
      %v886 = vadd.s32 %v883, 24
      %v887 = vadd.s32 %v883, 32
      %v888 = vadd.s32 %v883, 40
      %v889 = vadd.s32 %v883, 48
      %v890 = vadd.s32 %v883, 56
      %v891 = vadd.s32 %v883, 64
      %v892 = vadd.s32 %v883, 72
      %v893 = vadd.s32 %v883, 80
      %v894 = vadd.s32 %v883, 88
      %v895 = vadd.s32 %v883, 96
      %v896 = vadd.s32 %v883, 104
      %v897 = vadd.s32 %v883, 112
      %v898 = vadd.s32 %v883, 120
      %v899 = vstv %s99
      %v900 = vadd.s32 %v883, %v899
      %v901 = vadd.s32 %v884, %v899
      %v902 = vadd.s32 %v885, %v899
      %v903 = vadd.s32 %v886, %v899
      %v904 = vadd.s32 %v887, %v899
      %v905 = vadd.s32 %v888, %v899
      %v906 = vadd.s32 %v889, %v899
      %v907 = vadd.s32 %v890, %v899
      %v908 = vadd.s32 %v891, %v899
      %v909 = vadd.s32 %v892, %v899
      %v910 = vadd.s32 %v893, %v899
      %v911 = vadd.s32 %v894, %v899
      %v912 = vadd.s32 %v895, %v899
      %v913 = vadd.s32 %v896, %v899
      %v914 = vadd.s32 %v897, %v899
      %v915 = vadd.s32 %v898, %v899
      %vm916 = vcmp.eq.s32.totalorder %v880, %v900
      %vm917 = vcmp.eq.s32.totalorder %v881, %v900
      %vm918 = vcmp.eq.s32.totalorder %v880, %v901
      %vm919 = vcmp.eq.s32.totalorder %v881, %v901
      %vm920 = vcmp.eq.s32.totalorder %v880, %v902
      %vm921 = vcmp.eq.s32.totalorder %v881, %v902
      %vm922 = vcmp.eq.s32.totalorder %v880, %v903
      %vm923 = vcmp.eq.s32.totalorder %v881, %v903
      %vm924 = vcmp.eq.s32.totalorder %v880, %v904
      %vm925 = vcmp.eq.s32.totalorder %v881, %v904
      %vm926 = vcmp.eq.s32.totalorder %v880, %v905
      %vm927 = vcmp.eq.s32.totalorder %v881, %v905
      %vm928 = vcmp.eq.s32.totalorder %v880, %v906
      %vm929 = vcmp.eq.s32.totalorder %v881, %v906
      %vm930 = vcmp.eq.s32.totalorder %v880, %v907
      %vm931 = vcmp.eq.s32.totalorder %v881, %v907
      %vm932 = vcmp.eq.s32.totalorder %v880, %v908
      %vm933 = vcmp.eq.s32.totalorder %v881, %v908
      %vm934 = vcmp.eq.s32.totalorder %v880, %v909
      %vm935 = vcmp.eq.s32.totalorder %v881, %v909
      %vm936 = vcmp.eq.s32.totalorder %v880, %v910
      %vm937 = vcmp.eq.s32.totalorder %v881, %v910
      %vm938 = vcmp.eq.s32.totalorder %v880, %v911
      %vm939 = vcmp.eq.s32.totalorder %v881, %v911
      %vm940 = vcmp.eq.s32.totalorder %v880, %v912
      %vm941 = vcmp.eq.s32.totalorder %v881, %v912
      %vm942 = vcmp.eq.s32.totalorder %v880, %v913
      %vm943 = vcmp.eq.s32.totalorder %v881, %v913
      %vm944 = vcmp.eq.s32.totalorder %v880, %v914
      %vm945 = vcmp.eq.s32.totalorder %v881, %v914
      %vm946 = vcmp.eq.s32.totalorder %v880, %v915
      %vm947 = vcmp.eq.s32.totalorder %v881, %v915
      %v948 = vsel %vm916, %v721, 0.0
      %v949 = vsel %vm917, %v723, 0.0
      %v950 = vsel %vm918, %v725, 0.0
      %v951 = vsel %vm919, %v727, 0.0
      %v952 = vsel %vm920, %v731, 0.0
      %v953 = vsel %vm921, %v733, 0.0
      %v954 = vsel %vm922, %v735, 0.0
      %v955 = vsel %vm923, %v737, 0.0
      %v956 = vsel %vm924, %v741, 0.0
      %v957 = vsel %vm925, %v743, 0.0
      %v958 = vsel %vm926, %v745, 0.0
      %v959 = vsel %vm927, %v747, 0.0
      %v960 = vsel %vm928, %v751, 0.0
      %v961 = vsel %vm929, %v753, 0.0
      %v962 = vsel %vm930, %v755, 0.0
      %v963 = vsel %vm931, %v757, 0.0
      %v964 = vsel %vm932, %v761, 0.0
      %v965 = vsel %vm933, %v763, 0.0
      %v966 = vsel %vm934, %v765, 0.0
      %v967 = vsel %vm935, %v767, 0.0
      %v968 = vsel %vm936, %v771, 0.0
      %v969 = vsel %vm937, %v773, 0.0
      %v970 = vsel %vm938, %v775, 0.0
      %v971 = vsel %vm939, %v777, 0.0
      %v972 = vsel %vm940, %v781, 0.0
      %v973 = vsel %vm941, %v783, 0.0
      %v974 = vsel %vm942, %v785, 0.0
      %v975 = vsel %vm943, %v787, 0.0
      %v976 = vsel %vm944, %v791, 0.0
      %v977 = vsel %vm945, %v793, 0.0
      %v978 = vsel %vm946, %v795, 0.0
      %v979 = vsel %vm947, %v797, 0.0
      %v980 = vadd.f32 %v948, %v949
      %981 = vadd.xlane.f32.xlu0 %v980
      %v982 = vpop.xlane.xlu0 %981
      %v983 = vadd.f32 %v950, %v951
      %984 = vadd.xlane.f32.xlu0 %v983
      %v985 = vpop.xlane.xlu0 %984
      %v986 = vadd.f32 %v952, %v953
      %987 = vadd.xlane.f32.xlu0 %v986
      %v988 = vpop.xlane.xlu0 %987
      %v989 = vadd.f32 %v954, %v955
      %990 = vadd.xlane.f32.xlu0 %v989
      %v991 = vpop.xlane.xlu0 %990
      %v992 = vadd.f32 %v956, %v957
      %993 = vadd.xlane.f32.xlu0 %v992
      %v994 = vpop.xlane.xlu0 %993
      %v995 = vadd.f32 %v958, %v959
      %996 = vadd.xlane.f32.xlu0 %v995
      %v997 = vpop.xlane.xlu0 %996
      %v998 = vadd.f32 %v960, %v961
      %999 = vadd.xlane.f32.xlu0 %v998
      %v1000 = vpop.xlane.xlu0 %999
      %v1001 = vadd.f32 %v962, %v963
      %1002 = vadd.xlane.f32.xlu0 %v1001
      %v1003 = vpop.xlane.xlu0 %1002
      %v1004 = vadd.f32 %v964, %v965
      %1005 = vadd.xlane.f32.xlu0 %v1004
      %v1006 = vpop.xlane.xlu0 %1005
      %v1007 = vadd.f32 %v966, %v967
      %1008 = vadd.xlane.f32.xlu0 %v1007
      %v1009 = vpop.xlane.xlu0 %1008
      %v1010 = vadd.f32 %v968, %v969
      %1011 = vadd.xlane.f32.xlu0 %v1010
      %v1012 = vpop.xlane.xlu0 %1011
      %v1013 = vadd.f32 %v970, %v971
      %1014 = vadd.xlane.f32.xlu0 %v1013
      %v1015 = vpop.xlane.xlu0 %1014
      %v1016 = vadd.f32 %v972, %v973
      %1017 = vadd.xlane.f32.xlu0 %v1016
      %v1018 = vpop.xlane.xlu0 %1017
      %v1019 = vadd.f32 %v974, %v975
      %1020 = vadd.xlane.f32.xlu0 %v1019
      %v1021 = vpop.xlane.xlu0 %1020
      %v1022 = vadd.f32 %v976, %v977
      %1023 = vadd.xlane.f32.xlu0 %v1022
      %v1024 = vpop.xlane.xlu0 %1023
      %v1025 = vadd.f32 %v978, %v979
      %1026 = vadd.xlane.f32.xlu0 %v1025
      %v1027 = vpop.xlane.xlu0 %1026
      %v1028 = vsel %vm916, %v608, 0.0
      %v1029 = vsel %vm917, %v610, 0.0
      %v1030 = vsel %vm918, %v612, 0.0
      %v1031 = vsel %vm919, %v614, 0.0
      %v1032 = vsel %vm920, %v618, 0.0
      %v1033 = vsel %vm921, %v620, 0.0
      %v1034 = vsel %vm922, %v622, 0.0
      %v1035 = vsel %vm923, %v624, 0.0
      %v1036 = vsel %vm924, %v628, 0.0
      %v1037 = vsel %vm925, %v630, 0.0
      %v1038 = vsel %vm926, %v632, 0.0
      %v1039 = vsel %vm927, %v634, 0.0
      %v1040 = vsel %vm928, %v638, 0.0
      %v1041 = vsel %vm929, %v640, 0.0
      %v1042 = vsel %vm930, %v642, 0.0
      %v1043 = vsel %vm931, %v644, 0.0
      %v1044 = vsel %vm932, %v648, 0.0
      %v1045 = vsel %vm933, %v650, 0.0
      %v1046 = vsel %vm934, %v652, 0.0
      %v1047 = vsel %vm935, %v654, 0.0
      %v1048 = vsel %vm936, %v658, 0.0
      %v1049 = vsel %vm937, %v660, 0.0
      %v1050 = vsel %vm938, %v662, 0.0
      %v1051 = vsel %vm939, %v664, 0.0
      %v1052 = vsel %vm940, %v668, 0.0
      %v1053 = vsel %vm941, %v670, 0.0
      %v1054 = vsel %vm942, %v672, 0.0
      %v1055 = vsel %vm943, %v674, 0.0
      %v1056 = vsel %vm944, %v678, 0.0
      %v1057 = vsel %vm945, %v680, 0.0
      %v1058 = vsel %vm946, %v682, 0.0
      %v1059 = vsel %vm947, %v684, 0.0
      %v1060 = vadd.f32 %v1028, %v1029
      %1061 = vadd.xlane.f32.xlu0 %v1060
      %v1062 = vpop.xlane.xlu0 %1061
      %v1063 = vadd.f32 %v1030, %v1031
      %1064 = vadd.xlane.f32.xlu0 %v1063
      %v1065 = vpop.xlane.xlu0 %1064
      %v1066 = vadd.f32 %v1032, %v1033
      %1067 = vadd.xlane.f32.xlu0 %v1066
      %v1068 = vpop.xlane.xlu0 %1067
      %v1069 = vadd.f32 %v1034, %v1035
      %1070 = vadd.xlane.f32.xlu0 %v1069
      %v1071 = vpop.xlane.xlu0 %1070
      %v1072 = vadd.f32 %v1036, %v1037
      %1073 = vadd.xlane.f32.xlu0 %v1072
      %v1074 = vpop.xlane.xlu0 %1073
      %v1075 = vadd.f32 %v1038, %v1039
      %1076 = vadd.xlane.f32.xlu0 %v1075
      %v1077 = vpop.xlane.xlu0 %1076
      %v1078 = vadd.f32 %v1040, %v1041
      %1079 = vadd.xlane.f32.xlu0 %v1078
      %v1080 = vpop.xlane.xlu0 %1079
      %v1081 = vadd.f32 %v1042, %v1043
      %1082 = vadd.xlane.f32.xlu0 %v1081
      %v1083 = vpop.xlane.xlu0 %1082
      %v1084 = vadd.f32 %v1044, %v1045
      %1085 = vadd.xlane.f32.xlu0 %v1084
      %v1086 = vpop.xlane.xlu0 %1085
      %v1087 = vadd.f32 %v1046, %v1047
      %1088 = vadd.xlane.f32.xlu0 %v1087
      %v1089 = vpop.xlane.xlu0 %1088
      %v1090 = vadd.f32 %v1048, %v1049
      %1091 = vadd.xlane.f32.xlu0 %v1090
      %v1092 = vpop.xlane.xlu0 %1091
      %v1093 = vadd.f32 %v1050, %v1051
      %1094 = vadd.xlane.f32.xlu0 %v1093
      %v1095 = vpop.xlane.xlu0 %1094
      %v1096 = vadd.f32 %v1052, %v1053
      %1097 = vadd.xlane.f32.xlu0 %v1096
      %v1098 = vpop.xlane.xlu0 %1097
      %v1099 = vadd.f32 %v1054, %v1055
      %1100 = vadd.xlane.f32.xlu0 %v1099
      %v1101 = vpop.xlane.xlu0 %1100
      %v1102 = vadd.f32 %v1056, %v1057
      %1103 = vadd.xlane.f32.xlu0 %v1102
      %v1104 = vpop.xlane.xlu0 %1103
      %v1105 = vadd.f32 %v1058, %v1059
      %1106 = vadd.xlane.f32.xlu0 %v1105
      %v1107 = vpop.xlane.xlu0 %1106
      %v1108 = vmul.f32 %v528, 0.8
      %v1109 = vmul.f32 %v530, 0.8
      %v1110 = vmul.f32 %v532, 0.8
      %v1111 = vmul.f32 %v534, 0.8
      %v1112 = vmul.f32 %v538, 0.8
      %v1113 = vmul.f32 %v540, 0.8
      %v1114 = vmul.f32 %v542, 0.8
      %v1115 = vmul.f32 %v544, 0.8
      %v1116 = vmul.f32 %v548, 0.8
      %v1117 = vmul.f32 %v550, 0.8
      %v1118 = vmul.f32 %v552, 0.8
      %v1119 = vmul.f32 %v554, 0.8
      %v1120 = vmul.f32 %v558, 0.8
      %v1121 = vmul.f32 %v560, 0.8
      %v1122 = vmul.f32 %v562, 0.8
      %v1123 = vmul.f32 %v564, 0.8
      %v1124 = vmul.f32 %v568, 0.8
      %v1125 = vmul.f32 %v570, 0.8
      %v1126 = vmul.f32 %v572, 0.8
      %v1127 = vmul.f32 %v574, 0.8
      %v1128 = vmul.f32 %v578, 0.8
      %v1129 = vmul.f32 %v580, 0.8
      %v1130 = vmul.f32 %v582, 0.8
      %v1131 = vmul.f32 %v584, 0.8
      %v1132 = vmul.f32 %v588, 0.8
      %v1133 = vmul.f32 %v590, 0.8
      %v1134 = vmul.f32 %v592, 0.8
      %v1135 = vmul.f32 %v594, 0.8
      %v1136 = vmul.f32 %v598, 0.8
      %v1137 = vmul.f32 %v600, 0.8
      %v1138 = vmul.f32 %v602, 0.8
      %v1139 = vmul.f32 %v604, 0.8
      %v1140 = vsel %vm916, 0.0, %v1108
      %v1141 = vsel %vm917, 0.0, %v1109
      %v1142 = vsel %vm918, 0.0, %v1110
      %v1143 = vsel %vm919, 0.0, %v1111
      %v1144 = vsel %vm920, 0.0, %v1112
      %v1145 = vsel %vm921, 0.0, %v1113
      %v1146 = vsel %vm922, 0.0, %v1114
      %v1147 = vsel %vm923, 0.0, %v1115
      %v1148 = vsel %vm924, 0.0, %v1116
      %v1149 = vsel %vm925, 0.0, %v1117
      %v1150 = vsel %vm926, 0.0, %v1118
      %v1151 = vsel %vm927, 0.0, %v1119
      %v1152 = vsel %vm928, 0.0, %v1120
      %v1153 = vsel %vm929, 0.0, %v1121
      %v1154 = vsel %vm930, 0.0, %v1122
      %v1155 = vsel %vm931, 0.0, %v1123
      %v1156 = vsel %vm932, 0.0, %v1124
      %v1157 = vsel %vm933, 0.0, %v1125
      %v1158 = vsel %vm934, 0.0, %v1126
      %v1159 = vsel %vm935, 0.0, %v1127
      %v1160 = vsel %vm936, 0.0, %v1128
      %v1161 = vsel %vm937, 0.0, %v1129
      %v1162 = vsel %vm938, 0.0, %v1130
      %v1163 = vsel %vm939, 0.0, %v1131
      %v1164 = vsel %vm940, 0.0, %v1132
      %v1165 = vsel %vm941, 0.0, %v1133
      %v1166 = vsel %vm942, 0.0, %v1134
      %v1167 = vsel %vm943, 0.0, %v1135
      %v1168 = vsel %vm944, 0.0, %v1136
      %v1169 = vsel %vm945, 0.0, %v1137
      %v1170 = vsel %vm946, 0.0, %v1138
      %v1171 = vsel %vm947, 0.0, %v1139
      %v1172 = vmul.f32 %v801, 0.8
      %v1173 = vmul.f32 %v803, 0.8
      %v1174 = vmul.f32 %v805, 0.8
      %v1175 = vmul.f32 %v807, 0.8
      %v1176 = vmul.f32 %v811, 0.8
      %v1177 = vmul.f32 %v813, 0.8
      %v1178 = vmul.f32 %v815, 0.8
      %v1179 = vmul.f32 %v817, 0.8
      %v1180 = vmul.f32 %v821, 0.8
      %v1181 = vmul.f32 %v823, 0.8
      %v1182 = vmul.f32 %v825, 0.8
      %v1183 = vmul.f32 %v827, 0.8
      %v1184 = vmul.f32 %v831, 0.8
      %v1185 = vmul.f32 %v833, 0.8
      %v1186 = vmul.f32 %v835, 0.8
      %v1187 = vmul.f32 %v837, 0.8
      %v1188 = vmul.f32 %v841, 0.8
      %v1189 = vmul.f32 %v843, 0.8
      %v1190 = vmul.f32 %v845, 0.8
      %v1191 = vmul.f32 %v847, 0.8
      %v1192 = vmul.f32 %v851, 0.8
      %v1193 = vmul.f32 %v853, 0.8
      %v1194 = vmul.f32 %v855, 0.8
      %v1195 = vmul.f32 %v857, 0.8
      %v1196 = vmul.f32 %v861, 0.8
      %v1197 = vmul.f32 %v863, 0.8
      %v1198 = vmul.f32 %v865, 0.8
      %v1199 = vmul.f32 %v867, 0.8
      %v1200 = vmul.f32 %v871, 0.8
      %v1201 = vmul.f32 %v873, 0.8
      %v1202 = vmul.f32 %v875, 0.8
      %v1203 = vmul.f32 %v877, 0.8
      %v1204 = vsel %vm916, 0.0, %v1172
      %v1205 = vsel %vm917, 0.0, %v1173
      %v1206 = vsel %vm918, 0.0, %v1174
      %v1207 = vsel %vm919, 0.0, %v1175
      %v1208 = vsel %vm920, 0.0, %v1176
      %v1209 = vsel %vm921, 0.0, %v1177
      %v1210 = vsel %vm922, 0.0, %v1178
      %v1211 = vsel %vm923, 0.0, %v1179
      %v1212 = vsel %vm924, 0.0, %v1180
      %v1213 = vsel %vm925, 0.0, %v1181
      %v1214 = vsel %vm926, 0.0, %v1182
      %v1215 = vsel %vm927, 0.0, %v1183
      %v1216 = vsel %vm928, 0.0, %v1184
      %v1217 = vsel %vm929, 0.0, %v1185
      %v1218 = vsel %vm930, 0.0, %v1186
      %v1219 = vsel %vm931, 0.0, %v1187
      %v1220 = vsel %vm932, 0.0, %v1188
      %v1221 = vsel %vm933, 0.0, %v1189
      %v1222 = vsel %vm934, 0.0, %v1190
      %v1223 = vsel %vm935, 0.0, %v1191
      %v1224 = vsel %vm936, 0.0, %v1192
      %v1225 = vsel %vm937, 0.0, %v1193
      %v1226 = vsel %vm938, 0.0, %v1194
      %v1227 = vsel %vm939, 0.0, %v1195
      %v1228 = vsel %vm940, 0.0, %v1196
      %v1229 = vsel %vm941, 0.0, %v1197
      %v1230 = vsel %vm942, 0.0, %v1198
      %v1231 = vsel %vm943, 0.0, %v1199
      %v1232 = vsel %vm944, 0.0, %v1200
      %v1233 = vsel %vm945, 0.0, %v1201
      %v1234 = vsel %vm946, 0.0, %v1202
      %v1235 = vsel %vm947, 0.0, %v1203
      %v1236 = vmul.f32 %v721, 1.442695
      %v1237 = vpow.pop %v1236
      %v1238 = vmul.f32 %v723, 1.442695
      %v1239 = vpow.pop %v1238
      %v1240 = vmul.f32 %v725, 1.442695
      %v1241 = vpow.pop %v1240
      %v1242 = vmul.f32 %v727, 1.442695
      %v1243 = vpow.pop %v1242
      %v1244 = vmul.f32 %v731, 1.442695
      %v1245 = vpow.pop %v1244
      %v1246 = vmul.f32 %v733, 1.442695
      %v1247 = vpow.pop %v1246
      %v1248 = vmul.f32 %v735, 1.442695
      %v1249 = vpow.pop %v1248
      %v1250 = vmul.f32 %v737, 1.442695
      %v1251 = vpow.pop %v1250
      %v1252 = vmul.f32 %v741, 1.442695
      %v1253 = vpow.pop %v1252
      %v1254 = vmul.f32 %v743, 1.442695
      %v1255 = vpow.pop %v1254
      %v1256 = vmul.f32 %v745, 1.442695
      %v1257 = vpow.pop %v1256
      %v1258 = vmul.f32 %v747, 1.442695
      %v1259 = vpow.pop %v1258
      %v1260 = vmul.f32 %v751, 1.442695
      %v1261 = vpow.pop %v1260
      %v1262 = vmul.f32 %v753, 1.442695
      %v1263 = vpow.pop %v1262
      %v1264 = vmul.f32 %v755, 1.442695
      %v1265 = vpow.pop %v1264
      %v1266 = vmul.f32 %v757, 1.442695
      %v1267 = vpow.pop %v1266
      %v1268 = vmul.f32 %v761, 1.442695
      %v1269 = vpow.pop %v1268
      %v1270 = vmul.f32 %v763, 1.442695
      %v1271 = vpow.pop %v1270
      %v1272 = vmul.f32 %v765, 1.442695
      %v1273 = vpow.pop %v1272
      %v1274 = vmul.f32 %v767, 1.442695
      %v1275 = vpow.pop %v1274
      %v1276 = vmul.f32 %v771, 1.442695
      %v1277 = vpow.pop %v1276
      %v1278 = vmul.f32 %v773, 1.442695
      %v1279 = vpow.pop %v1278
      %v1280 = vmul.f32 %v775, 1.442695
      %v1281 = vpow.pop %v1280
      %v1282 = vmul.f32 %v777, 1.442695
      %v1283 = vpow.pop %v1282
      %v1284 = vmul.f32 %v781, 1.442695
      %v1285 = vpow.pop %v1284
      %v1286 = vmul.f32 %v783, 1.442695
      %v1287 = vpow.pop %v1286
      %v1288 = vmul.f32 %v785, 1.442695
      %v1289 = vpow.pop %v1288
      %v1290 = vmul.f32 %v787, 1.442695
      %v1291 = vpow.pop %v1290
      %v1292 = vmul.f32 %v791, 1.442695
      %v1293 = vpow.pop %v1292
      %v1294 = vmul.f32 %v793, 1.442695
      %v1295 = vpow.pop %v1294
      %v1296 = vmul.f32 %v795, 1.442695
      %v1297 = vpow.pop %v1296
      %v1298 = vmul.f32 %v797, 1.442695
      %v1299 = vpow.pop %v1298
      %v1300 = vadd.f32 %v1237, %v1239
      %1301 = vadd.xlane.f32.xlu0 %v1300
      %v1302 = vpop.xlane.xlu0 %1301
      %v1303 = vadd.f32 %v1241, %v1243
      %1304 = vadd.xlane.f32.xlu0 %v1303
      %v1305 = vpop.xlane.xlu0 %1304
      %v1306 = vadd.f32 %v1245, %v1247
      %1307 = vadd.xlane.f32.xlu0 %v1306
      %v1308 = vpop.xlane.xlu0 %1307
      %v1309 = vadd.f32 %v1249, %v1251
      %1310 = vadd.xlane.f32.xlu0 %v1309
      %v1311 = vpop.xlane.xlu0 %1310
      %v1312 = vadd.f32 %v1253, %v1255
      %1313 = vadd.xlane.f32.xlu0 %v1312
      %v1314 = vpop.xlane.xlu0 %1313
      %v1315 = vadd.f32 %v1257, %v1259
      %1316 = vadd.xlane.f32.xlu0 %v1315
      %v1317 = vpop.xlane.xlu0 %1316
      %v1318 = vadd.f32 %v1261, %v1263
      %1319 = vadd.xlane.f32.xlu0 %v1318
      %v1320 = vpop.xlane.xlu0 %1319
      %v1321 = vadd.f32 %v1265, %v1267
      %1322 = vadd.xlane.f32.xlu0 %v1321
      %v1323 = vpop.xlane.xlu0 %1322
      %v1324 = vadd.f32 %v1269, %v1271
      %1325 = vadd.xlane.f32.xlu0 %v1324
      %v1326 = vpop.xlane.xlu0 %1325
      %v1327 = vadd.f32 %v1273, %v1275
      %1328 = vadd.xlane.f32.xlu0 %v1327
      %v1329 = vpop.xlane.xlu0 %1328
      %v1330 = vadd.f32 %v1277, %v1279
      %1331 = vadd.xlane.f32.xlu0 %v1330
      %v1332 = vpop.xlane.xlu0 %1331
      %v1333 = vadd.f32 %v1281, %v1283
      %1334 = vadd.xlane.f32.xlu0 %v1333
      %v1335 = vpop.xlane.xlu0 %1334
      %v1336 = vadd.f32 %v1285, %v1287
      %1337 = vadd.xlane.f32.xlu0 %v1336
      %v1338 = vpop.xlane.xlu0 %1337
      %v1339 = vadd.f32 %v1289, %v1291
      %1340 = vadd.xlane.f32.xlu0 %v1339
      %v1341 = vpop.xlane.xlu0 %1340
      %v1342 = vadd.f32 %v1293, %v1295
      %1343 = vadd.xlane.f32.xlu0 %v1342
      %v1344 = vpop.xlane.xlu0 %1343
      %v1345 = vadd.f32 %v1297, %v1299
      %1346 = vadd.xlane.f32.xlu0 %v1345
      %v1347 = vpop.xlane.xlu0 %1346
      %v1348 = vmul.f32 %v1140, 1.442695
      %v1349 = vpow.pop %v1348
      %v1350 = vmul.f32 %v1141, 1.442695
      %v1351 = vpow.pop %v1350
      %v1352 = vmul.f32 %v1142, 1.442695
      %v1353 = vpow.pop %v1352
      %v1354 = vmul.f32 %v1143, 1.442695
      %v1355 = vpow.pop %v1354
      %v1356 = vmul.f32 %v1144, 1.442695
      %v1357 = vpow.pop %v1356
      %v1358 = vmul.f32 %v1145, 1.442695
      %v1359 = vpow.pop %v1358
      %v1360 = vmul.f32 %v1146, 1.442695
      %v1361 = vpow.pop %v1360
      %v1362 = vmul.f32 %v1147, 1.442695
      %v1363 = vpow.pop %v1362
      %v1364 = vmul.f32 %v1148, 1.442695
      %v1365 = vpow.pop %v1364
      %v1366 = vmul.f32 %v1149, 1.442695
      %v1367 = vpow.pop %v1366
      %v1368 = vmul.f32 %v1150, 1.442695
      %v1369 = vpow.pop %v1368
      %v1370 = vmul.f32 %v1151, 1.442695
      %v1371 = vpow.pop %v1370
      %v1372 = vmul.f32 %v1152, 1.442695
      %v1373 = vpow.pop %v1372
      %v1374 = vmul.f32 %v1153, 1.442695
      %v1375 = vpow.pop %v1374
      %v1376 = vmul.f32 %v1154, 1.442695
      %v1377 = vpow.pop %v1376
      %v1378 = vmul.f32 %v1155, 1.442695
      %v1379 = vpow.pop %v1378
      %v1380 = vmul.f32 %v1156, 1.442695
      %v1381 = vpow.pop %v1380
      %v1382 = vmul.f32 %v1157, 1.442695
      %v1383 = vpow.pop %v1382
      %v1384 = vmul.f32 %v1158, 1.442695
      %v1385 = vpow.pop %v1384
      %v1386 = vmul.f32 %v1159, 1.442695
      %v1387 = vpow.pop %v1386
      %v1388 = vmul.f32 %v1160, 1.442695
      %v1389 = vpow.pop %v1388
      %v1390 = vmul.f32 %v1161, 1.442695
      %v1391 = vpow.pop %v1390
      %v1392 = vmul.f32 %v1162, 1.442695
      %v1393 = vpow.pop %v1392
      %v1394 = vmul.f32 %v1163, 1.442695
      %v1395 = vpow.pop %v1394
      %v1396 = vmul.f32 %v1164, 1.442695
      %v1397 = vpow.pop %v1396
      %v1398 = vmul.f32 %v1165, 1.442695
      %v1399 = vpow.pop %v1398
      %v1400 = vmul.f32 %v1166, 1.442695
      %v1401 = vpow.pop %v1400
      %v1402 = vmul.f32 %v1167, 1.442695
      %v1403 = vpow.pop %v1402
      %v1404 = vmul.f32 %v1168, 1.442695
      %v1405 = vpow.pop %v1404
      %v1406 = vmul.f32 %v1169, 1.442695
      %v1407 = vpow.pop %v1406
      %v1408 = vmul.f32 %v1170, 1.442695
      %v1409 = vpow.pop %v1408
      %v1410 = vmul.f32 %v1171, 1.442695
      %v1411 = vpow.pop %v1410
      %v1412 = vadd.f32 %v1349, %v1351
      %1413 = vadd.xlane.f32.xlu0 %v1412
      %v1414 = vpop.xlane.xlu0 %1413
      %v1415 = vadd.f32 %v1353, %v1355
      %1416 = vadd.xlane.f32.xlu0 %v1415
      %v1417 = vpop.xlane.xlu0 %1416
      %v1418 = vadd.f32 %v1357, %v1359
      %1419 = vadd.xlane.f32.xlu0 %v1418
      %v1420 = vpop.xlane.xlu0 %1419
      %v1421 = vadd.f32 %v1361, %v1363
      %1422 = vadd.xlane.f32.xlu0 %v1421
      %v1423 = vpop.xlane.xlu0 %1422
      %v1424 = vadd.f32 %v1365, %v1367
      %1425 = vadd.xlane.f32.xlu0 %v1424
      %v1426 = vpop.xlane.xlu0 %1425
      %v1427 = vadd.f32 %v1369, %v1371
      %1428 = vadd.xlane.f32.xlu0 %v1427
      %v1429 = vpop.xlane.xlu0 %1428
      %v1430 = vadd.f32 %v1373, %v1375
      %1431 = vadd.xlane.f32.xlu0 %v1430
      %v1432 = vpop.xlane.xlu0 %1431
      %v1433 = vadd.f32 %v1377, %v1379
      %1434 = vadd.xlane.f32.xlu0 %v1433
      %v1435 = vpop.xlane.xlu0 %1434
      %v1436 = vadd.f32 %v1381, %v1383
      %1437 = vadd.xlane.f32.xlu0 %v1436
      %v1438 = vpop.xlane.xlu0 %1437
      %v1439 = vadd.f32 %v1385, %v1387
      %1440 = vadd.xlane.f32.xlu0 %v1439
      %v1441 = vpop.xlane.xlu0 %1440
      %v1442 = vadd.f32 %v1389, %v1391
      %1443 = vadd.xlane.f32.xlu0 %v1442
      %v1444 = vpop.xlane.xlu0 %1443
      %v1445 = vadd.f32 %v1393, %v1395
      %1446 = vadd.xlane.f32.xlu0 %v1445
      %v1447 = vpop.xlane.xlu0 %1446
      %v1448 = vadd.f32 %v1397, %v1399
      %1449 = vadd.xlane.f32.xlu0 %v1448
      %v1450 = vpop.xlane.xlu0 %1449
      %v1451 = vadd.f32 %v1401, %v1403
      %1452 = vadd.xlane.f32.xlu0 %v1451
      %v1453 = vpop.xlane.xlu0 %1452
      %v1454 = vadd.f32 %v1405, %v1407
      %1455 = vadd.xlane.f32.xlu0 %v1454
      %v1456 = vpop.xlane.xlu0 %1455
      %v1457 = vadd.f32 %v1409, %v1411
      %1458 = vadd.xlane.f32.xlu0 %v1457
      %v1459 = vpop.xlane.xlu0 %1458
      %v1460 = vadd.f32 %v1302, %v1414
      %v1461 = vadd.f32 %v1305, %v1417
      %v1462 = vadd.f32 %v1308, %v1420
      %v1463 = vadd.f32 %v1311, %v1423
      %v1464 = vadd.f32 %v1314, %v1426
      %v1465 = vadd.f32 %v1317, %v1429
      %v1466 = vadd.f32 %v1320, %v1432
      %v1467 = vadd.f32 %v1323, %v1435
      %v1468 = vadd.f32 %v1326, %v1438
      %v1469 = vadd.f32 %v1329, %v1441
      %v1470 = vadd.f32 %v1332, %v1444
      %v1471 = vadd.f32 %v1335, %v1447
      %v1472 = vadd.f32 %v1338, %v1450
      %v1473 = vadd.f32 %v1341, %v1453
      %v1474 = vadd.f32 %v1344, %v1456
      %v1475 = vadd.f32 %v1347, %v1459
      %v1476 = vmul.f32 %v608, 1.442695
      %v1477 = vpow.pop %v1476
      %v1478 = vmul.f32 %v610, 1.442695
      %v1479 = vpow.pop %v1478
      %v1480 = vmul.f32 %v612, 1.442695
      %v1481 = vpow.pop %v1480
      %v1482 = vmul.f32 %v614, 1.442695
      %v1483 = vpow.pop %v1482
      %v1484 = vmul.f32 %v618, 1.442695
      %v1485 = vpow.pop %v1484
      %v1486 = vmul.f32 %v620, 1.442695
      %v1487 = vpow.pop %v1486
      %v1488 = vmul.f32 %v622, 1.442695
      %v1489 = vpow.pop %v1488
      %v1490 = vmul.f32 %v624, 1.442695
      %v1491 = vpow.pop %v1490
      %v1492 = vmul.f32 %v628, 1.442695
      %v1493 = vpow.pop %v1492
      %v1494 = vmul.f32 %v630, 1.442695
      %v1495 = vpow.pop %v1494
      %v1496 = vmul.f32 %v632, 1.442695
      %v1497 = vpow.pop %v1496
      %v1498 = vmul.f32 %v634, 1.442695
      %v1499 = vpow.pop %v1498
      %v1500 = vmul.f32 %v638, 1.442695
      %v1501 = vpow.pop %v1500
      %v1502 = vmul.f32 %v640, 1.442695
      %v1503 = vpow.pop %v1502
      %v1504 = vmul.f32 %v642, 1.442695
      %v1505 = vpow.pop %v1504
      %v1506 = vmul.f32 %v644, 1.442695
      %v1507 = vpow.pop %v1506
      %v1508 = vmul.f32 %v648, 1.442695
      %v1509 = vpow.pop %v1508
      %v1510 = vmul.f32 %v650, 1.442695
      %v1511 = vpow.pop %v1510
      %v1512 = vmul.f32 %v652, 1.442695
      %v1513 = vpow.pop %v1512
      %v1514 = vmul.f32 %v654, 1.442695
      %v1515 = vpow.pop %v1514
      %v1516 = vmul.f32 %v658, 1.442695
      %v1517 = vpow.pop %v1516
      %v1518 = vmul.f32 %v660, 1.442695
      %v1519 = vpow.pop %v1518
      %v1520 = vmul.f32 %v662, 1.442695
      %v1521 = vpow.pop %v1520
      %v1522 = vmul.f32 %v664, 1.442695
      %v1523 = vpow.pop %v1522
      %v1524 = vmul.f32 %v668, 1.442695
      %v1525 = vpow.pop %v1524
      %v1526 = vmul.f32 %v670, 1.442695
      %v1527 = vpow.pop %v1526
      %v1528 = vmul.f32 %v672, 1.442695
      %v1529 = vpow.pop %v1528
      %v1530 = vmul.f32 %v674, 1.442695
      %v1531 = vpow.pop %v1530
      %v1532 = vmul.f32 %v678, 1.442695
      %v1533 = vpow.pop %v1532
      %v1534 = vmul.f32 %v680, 1.442695
      %v1535 = vpow.pop %v1534
      %v1536 = vmul.f32 %v682, 1.442695
      %v1537 = vpow.pop %v1536
      %v1538 = vmul.f32 %v684, 1.442695
      %v1539 = vpow.pop %v1538
      %v1540 = vadd.f32 %v1477, %v1479
      %1541 = vadd.xlane.f32.xlu0 %v1540
      %v1542 = vpop.xlane.xlu0 %1541
      %v1543 = vadd.f32 %v1481, %v1483
      %1544 = vadd.xlane.f32.xlu0 %v1543
      %v1545 = vpop.xlane.xlu0 %1544
      %v1546 = vadd.f32 %v1485, %v1487
      %1547 = vadd.xlane.f32.xlu0 %v1546
      %v1548 = vpop.xlane.xlu0 %1547
      %v1549 = vadd.f32 %v1489, %v1491
      %1550 = vadd.xlane.f32.xlu0 %v1549
      %v1551 = vpop.xlane.xlu0 %1550
      %v1552 = vadd.f32 %v1493, %v1495
      %1553 = vadd.xlane.f32.xlu0 %v1552
      %v1554 = vpop.xlane.xlu0 %1553
      %v1555 = vadd.f32 %v1497, %v1499
      %1556 = vadd.xlane.f32.xlu0 %v1555
      %v1557 = vpop.xlane.xlu0 %1556
      %v1558 = vadd.f32 %v1501, %v1503
      %1559 = vadd.xlane.f32.xlu0 %v1558
      %v1560 = vpop.xlane.xlu0 %1559
      %v1561 = vadd.f32 %v1505, %v1507
      %1562 = vadd.xlane.f32.xlu0 %v1561
      %v1563 = vpop.xlane.xlu0 %1562
      %v1564 = vadd.f32 %v1509, %v1511
      %1565 = vadd.xlane.f32.xlu0 %v1564
      %v1566 = vpop.xlane.xlu0 %1565
      %v1567 = vadd.f32 %v1513, %v1515
      %1568 = vadd.xlane.f32.xlu0 %v1567
      %v1569 = vpop.xlane.xlu0 %1568
      %v1570 = vadd.f32 %v1517, %v1519
      %1571 = vadd.xlane.f32.xlu0 %v1570
      %v1572 = vpop.xlane.xlu0 %1571
      %v1573 = vadd.f32 %v1521, %v1523
      %1574 = vadd.xlane.f32.xlu0 %v1573
      %v1575 = vpop.xlane.xlu0 %1574
      %v1576 = vadd.f32 %v1525, %v1527
      %1577 = vadd.xlane.f32.xlu0 %v1576
      %v1578 = vpop.xlane.xlu0 %1577
      %v1579 = vadd.f32 %v1529, %v1531
      %1580 = vadd.xlane.f32.xlu0 %v1579
      %v1581 = vpop.xlane.xlu0 %1580
      %v1582 = vadd.f32 %v1533, %v1535
      %1583 = vadd.xlane.f32.xlu0 %v1582
      %v1584 = vpop.xlane.xlu0 %1583
      %v1585 = vadd.f32 %v1537, %v1539
      %1586 = vadd.xlane.f32.xlu0 %v1585
      %v1587 = vpop.xlane.xlu0 %1586
      %v1588 = vmul.f32 %v1204, 1.442695
      %v1589 = vpow.pop %v1588
      %v1590 = vmul.f32 %v1205, 1.442695
      %v1591 = vpow.pop %v1590
      %v1592 = vmul.f32 %v1206, 1.442695
      %v1593 = vpow.pop %v1592
      %v1594 = vmul.f32 %v1207, 1.442695
      %v1595 = vpow.pop %v1594
      %v1596 = vmul.f32 %v1208, 1.442695
      %v1597 = vpow.pop %v1596
      %v1598 = vmul.f32 %v1209, 1.442695
      %v1599 = vpow.pop %v1598
      %v1600 = vmul.f32 %v1210, 1.442695
      %v1601 = vpow.pop %v1600
      %v1602 = vmul.f32 %v1211, 1.442695
      %v1603 = vpow.pop %v1602
      %v1604 = vmul.f32 %v1212, 1.442695
      %v1605 = vpow.pop %v1604
      %v1606 = vmul.f32 %v1213, 1.442695
      %v1607 = vpow.pop %v1606
      %v1608 = vmul.f32 %v1214, 1.442695
      %v1609 = vpow.pop %v1608
      %v1610 = vmul.f32 %v1215, 1.442695
      %v1611 = vpow.pop %v1610
      %v1612 = vmul.f32 %v1216, 1.442695
      %v1613 = vpow.pop %v1612
      %v1614 = vmul.f32 %v1217, 1.442695
      %v1615 = vpow.pop %v1614
      %v1616 = vmul.f32 %v1218, 1.442695
      %v1617 = vpow.pop %v1616
      %v1618 = vmul.f32 %v1219, 1.442695
      %v1619 = vpow.pop %v1618
      %v1620 = vmul.f32 %v1220, 1.442695
      %v1621 = vpow.pop %v1620
      %v1622 = vmul.f32 %v1221, 1.442695
      %v1623 = vpow.pop %v1622
      %v1624 = vmul.f32 %v1222, 1.442695
      %v1625 = vpow.pop %v1624
      %v1626 = vmul.f32 %v1223, 1.442695
      %v1627 = vpow.pop %v1626
      %v1628 = vmul.f32 %v1224, 1.442695
      %v1629 = vpow.pop %v1628
      %v1630 = vmul.f32 %v1225, 1.442695
      %v1631 = vpow.pop %v1630
      %v1632 = vmul.f32 %v1226, 1.442695
      %v1633 = vpow.pop %v1632
      %v1634 = vmul.f32 %v1227, 1.442695
      %v1635 = vpow.pop %v1634
      %v1636 = vmul.f32 %v1228, 1.442695
      %v1637 = vpow.pop %v1636
      %v1638 = vmul.f32 %v1229, 1.442695
      %v1639 = vpow.pop %v1638
      %v1640 = vmul.f32 %v1230, 1.442695
      %v1641 = vpow.pop %v1640
      %v1642 = vmul.f32 %v1231, 1.442695
      %v1643 = vpow.pop %v1642
      %v1644 = vmul.f32 %v1232, 1.442695
      %v1645 = vpow.pop %v1644
      %v1646 = vmul.f32 %v1233, 1.442695
      %v1647 = vpow.pop %v1646
      %v1648 = vmul.f32 %v1234, 1.442695
      %v1649 = vpow.pop %v1648
      %v1650 = vmul.f32 %v1235, 1.442695
      %v1651 = vpow.pop %v1650
      %v1652 = vadd.f32 %v1589, %v1591
      %1653 = vadd.xlane.f32.xlu0 %v1652
      %v1654 = vpop.xlane.xlu0 %1653
      %v1655 = vadd.f32 %v1593, %v1595
      %1656 = vadd.xlane.f32.xlu0 %v1655
      %v1657 = vpop.xlane.xlu0 %1656
      %v1658 = vadd.f32 %v1597, %v1599
      %1659 = vadd.xlane.f32.xlu0 %v1658
      %v1660 = vpop.xlane.xlu0 %1659
      %v1661 = vadd.f32 %v1601, %v1603
      %1662 = vadd.xlane.f32.xlu0 %v1661
      %v1663 = vpop.xlane.xlu0 %1662
      %v1664 = vadd.f32 %v1605, %v1607
      %1665 = vadd.xlane.f32.xlu0 %v1664
      %v1666 = vpop.xlane.xlu0 %1665
      %v1667 = vadd.f32 %v1609, %v1611
      %1668 = vadd.xlane.f32.xlu0 %v1667
      %v1669 = vpop.xlane.xlu0 %1668
      %v1670 = vadd.f32 %v1613, %v1615
      %1671 = vadd.xlane.f32.xlu0 %v1670
      %v1672 = vpop.xlane.xlu0 %1671
      %v1673 = vadd.f32 %v1617, %v1619
      %1674 = vadd.xlane.f32.xlu0 %v1673
      %v1675 = vpop.xlane.xlu0 %1674
      %v1676 = vadd.f32 %v1621, %v1623
      %1677 = vadd.xlane.f32.xlu0 %v1676
      %v1678 = vpop.xlane.xlu0 %1677
      %v1679 = vadd.f32 %v1625, %v1627
      %1680 = vadd.xlane.f32.xlu0 %v1679
      %v1681 = vpop.xlane.xlu0 %1680
      %v1682 = vadd.f32 %v1629, %v1631
      %1683 = vadd.xlane.f32.xlu0 %v1682
      %v1684 = vpop.xlane.xlu0 %1683
      %v1685 = vadd.f32 %v1633, %v1635
      %1686 = vadd.xlane.f32.xlu0 %v1685
      %v1687 = vpop.xlane.xlu0 %1686
      %v1688 = vadd.f32 %v1637, %v1639
      %1689 = vadd.xlane.f32.xlu0 %v1688
      %v1690 = vpop.xlane.xlu0 %1689
      %v1691 = vadd.f32 %v1641, %v1643
      %1692 = vadd.xlane.f32.xlu0 %v1691
      %v1693 = vpop.xlane.xlu0 %1692
      %v1694 = vadd.f32 %v1645, %v1647
      %1695 = vadd.xlane.f32.xlu0 %v1694
      %v1696 = vpop.xlane.xlu0 %1695
      %v1697 = vadd.f32 %v1649, %v1651
      %1698 = vadd.xlane.f32.xlu0 %v1697
      %v1699 = vpop.xlane.xlu0 %1698
      %v1700 = vadd.f32 %v1542, %v1654
      %v1701 = vadd.f32 %v1545, %v1657
      %v1702 = vadd.f32 %v1548, %v1660
      %v1703 = vadd.f32 %v1551, %v1663
      %v1704 = vadd.f32 %v1554, %v1666
      %v1705 = vadd.f32 %v1557, %v1669
      %v1706 = vadd.f32 %v1560, %v1672
      %v1707 = vadd.f32 %v1563, %v1675
      %v1708 = vadd.f32 %v1566, %v1678
      %v1709 = vadd.f32 %v1569, %v1681
      %v1710 = vadd.f32 %v1572, %v1684
      %v1711 = vadd.f32 %v1575, %v1687
      %v1712 = vadd.f32 %v1578, %v1690
      %v1713 = vadd.f32 %v1581, %v1693
      %v1714 = vadd.f32 %v1584, %v1696
      %v1715 = vadd.f32 %v1587, %v1699
      %v1716 = vlog2.pop %v1460
      %v1717 = vmul.f32 %v1716, 0.6931472
      %v1718 = vlog2.pop %v1461
      %v1719 = vmul.f32 %v1718, 0.6931472
      %v1720 = vlog2.pop %v1462
      %v1721 = vmul.f32 %v1720, 0.6931472
      %v1722 = vlog2.pop %v1463
      %v1723 = vmul.f32 %v1722, 0.6931472
      %v1724 = vlog2.pop %v1464
      %v1725 = vmul.f32 %v1724, 0.6931472
      %v1726 = vlog2.pop %v1465
      %v1727 = vmul.f32 %v1726, 0.6931472
      %v1728 = vlog2.pop %v1466
      %v1729 = vmul.f32 %v1728, 0.6931472
      %v1730 = vlog2.pop %v1467
      %v1731 = vmul.f32 %v1730, 0.6931472
      %v1732 = vlog2.pop %v1468
      %v1733 = vmul.f32 %v1732, 0.6931472
      %v1734 = vlog2.pop %v1469
      %v1735 = vmul.f32 %v1734, 0.6931472
      %v1736 = vlog2.pop %v1470
      %v1737 = vmul.f32 %v1736, 0.6931472
      %v1738 = vlog2.pop %v1471
      %v1739 = vmul.f32 %v1738, 0.6931472
      %v1740 = vlog2.pop %v1472
      %v1741 = vmul.f32 %v1740, 0.6931472
      %v1742 = vlog2.pop %v1473
      %v1743 = vmul.f32 %v1742, 0.6931472
      %v1744 = vlog2.pop %v1474
      %v1745 = vmul.f32 %v1744, 0.6931472
      %v1746 = vlog2.pop %v1475
      %v1747 = vmul.f32 %v1746, 0.6931472
      %v1748 = vsub.f32 %v1717, %v982
      %v1749 = vsub.f32 %v1719, %v985
      %v1750 = vsub.f32 %v1721, %v988
      %v1751 = vsub.f32 %v1723, %v991
      %v1752 = vsub.f32 %v1725, %v994
      %v1753 = vsub.f32 %v1727, %v997
      %v1754 = vsub.f32 %v1729, %v1000
      %v1755 = vsub.f32 %v1731, %v1003
      %v1756 = vsub.f32 %v1733, %v1006
      %v1757 = vsub.f32 %v1735, %v1009
      %v1758 = vsub.f32 %v1737, %v1012
      %v1759 = vsub.f32 %v1739, %v1015
      %v1760 = vsub.f32 %v1741, %v1018
      %v1761 = vsub.f32 %v1743, %v1021
      %v1762 = vsub.f32 %v1745, %v1024
      %v1763 = vsub.f32 %v1747, %v1027
      %v1764 = vlog2.pop %v1700
      %v1765 = vmul.f32 %v1764, 0.6931472
      %v1766 = vlog2.pop %v1701
      %v1767 = vmul.f32 %v1766, 0.6931472
      %v1768 = vlog2.pop %v1702
      %v1769 = vmul.f32 %v1768, 0.6931472
      %v1770 = vlog2.pop %v1703
      %v1771 = vmul.f32 %v1770, 0.6931472
      %v1772 = vlog2.pop %v1704
      %v1773 = vmul.f32 %v1772, 0.6931472
      %v1774 = vlog2.pop %v1705
      %v1775 = vmul.f32 %v1774, 0.6931472
      %v1776 = vlog2.pop %v1706
      %v1777 = vmul.f32 %v1776, 0.6931472
      %v1778 = vlog2.pop %v1707
      %v1779 = vmul.f32 %v1778, 0.6931472
      %v1780 = vlog2.pop %v1708
      %v1781 = vmul.f32 %v1780, 0.6931472
      %v1782 = vlog2.pop %v1709
      %v1783 = vmul.f32 %v1782, 0.6931472
      %v1784 = vlog2.pop %v1710
      %v1785 = vmul.f32 %v1784, 0.6931472
      %v1786 = vlog2.pop %v1711
      %v1787 = vmul.f32 %v1786, 0.6931472
      %v1788 = vlog2.pop %v1712
      %v1789 = vmul.f32 %v1788, 0.6931472
      %v1790 = vlog2.pop %v1713
      %v1791 = vmul.f32 %v1790, 0.6931472
      %v1792 = vlog2.pop %v1714
      %v1793 = vmul.f32 %v1792, 0.6931472
      %v1794 = vlog2.pop %v1715
      %v1795 = vmul.f32 %v1794, 0.6931472
      %v1796 = vsub.f32 %v1765, %v1062
      %v1797 = vsub.f32 %v1767, %v1065
      %v1798 = vsub.f32 %v1769, %v1068
      %v1799 = vsub.f32 %v1771, %v1071
      %v1800 = vsub.f32 %v1773, %v1074
      %v1801 = vsub.f32 %v1775, %v1077
      %v1802 = vsub.f32 %v1777, %v1080
      %v1803 = vsub.f32 %v1779, %v1083
      %v1804 = vsub.f32 %v1781, %v1086
      %v1805 = vsub.f32 %v1783, %v1089
      %v1806 = vsub.f32 %v1785, %v1092
      %v1807 = vsub.f32 %v1787, %v1095
      %v1808 = vsub.f32 %v1789, %v1098
      %v1809 = vsub.f32 %v1791, %v1101
      %v1810 = vsub.f32 %v1793, %v1104
      %v1811 = vsub.f32 %v1795, %v1107
      %v1812 = vadd.f32 %v1748, %v1796
      %v1813 = vadd.f32 %v1749, %v1797
      %v1814 = vadd.f32 %v1750, %v1798
      %v1815 = vadd.f32 %v1751, %v1799
      %v1816 = vadd.f32 %v1752, %v1800
      %v1817 = vadd.f32 %v1753, %v1801
      %v1818 = vadd.f32 %v1754, %v1802
      %v1819 = vadd.f32 %v1755, %v1803
      %v1820 = vadd.f32 %v1756, %v1804
      %v1821 = vadd.f32 %v1757, %v1805
      %v1822 = vadd.f32 %v1758, %v1806
      %v1823 = vadd.f32 %v1759, %v1807
      %v1824 = vadd.f32 %v1760, %v1808
      %v1825 = vadd.f32 %v1761, %v1809
      %v1826 = vadd.f32 %v1762, %v1810
      %v1827 = vadd.f32 %v1763, %v1811
      %vm1828 = vcmask 7168
      %1829 = vst.msk [vmem:[%s96] sm:$0xff] %vm1828, %v1812
      %1830 = vst.msk [vmem:[%s96 + $0x8] sm:$0xff] %vm1828, %v1813
      %1831 = vst.msk [vmem:[%s96 + $0x10] sm:$0xff] %vm1828, %v1814
      %1832 = vst.msk [vmem:[%s96 + $0x18] sm:$0xff] %vm1828, %v1815
      %1833 = vst.msk [vmem:[%s96 + $0x20] sm:$0xff] %vm1828, %v1816
      %1834 = vst.msk [vmem:[%s96 + $0x28] sm:$0xff] %vm1828, %v1817
      %1835 = vst.msk [vmem:[%s96 + $0x30] sm:$0xff] %vm1828, %v1818
      %1836 = vst.msk [vmem:[%s96 + $0x38] sm:$0xff] %vm1828, %v1819
      %1837 = vst.msk [vmem:[%s96 + $0x40] sm:$0xff] %vm1828, %v1820
      %1838 = vst.msk [vmem:[%s96 + $0x48] sm:$0xff] %vm1828, %v1821
      %1839 = vst.msk [vmem:[%s96 + $0x50] sm:$0xff] %vm1828, %v1822
      %1840 = vst.msk [vmem:[%s96 + $0x58] sm:$0xff] %vm1828, %v1823
      %1841 = vst.msk [vmem:[%s96 + $0x60] sm:$0xff] %vm1828, %v1824
      %1842 = vst.msk [vmem:[%s96 + $0x68] sm:$0xff] %vm1828, %v1825
      %1843 = vst.msk [vmem:[%s96 + $0x70] sm:$0xff] %vm1828, %v1826
      %1844 = vst.msk [vmem:[%s96 + $0x78] sm:$0xff] %vm1828, %v1827
      %s1845 = smul.u32 16, %s12
      %p1846 = scmp.lt.s32.totalorder %s1845, 31
      %s1847 = scalar_select %p1846, %s1845, 31
      %s1848 = smul.addr %s1847, 8
      %s1849 = scalar_lea.vmem %s1, %s1848
      // Predicated region
      $region25: #{crossclr_only_intra_modality.1} parent=23 // pred_check
        %p1850 = pneg %p51
      $region26: #{crossclr_only_intra_modality.1} parent=23 // pred_check_branch
        %1852 = sbr.rel (%p1850) target = $region28
      $region27: #{crossclr_only_intra_modality.1} parent=23 // pred_region
        %s1853 = smul.u32 16, %s12
      $region28: #{crossclr_only_intra_modality.1} parent=23 // pred_fallthru
        _
    $region24: #{crossclr_only_intra_modality.1} parent=5 // pred_fallthru
      _
    %p1854 = scmp.le.s32.totalorder 2, %s7
    // Predicated region
    $region29: #{crossclr_only_intra_modality.1} parent=5 // pred_check
      %p1855 = pneg %p1854
    $region30: #{crossclr_only_intra_modality.1} parent=5 // pred_check_branch
      %1857 = sbr.rel (%p1855) target = $region32
    $region31: #{crossclr_only_intra_modality.1} parent=5 // pred_region
      %s1858 = ssub.s32 %s7, 2
      // Predicated region
      $region33: #{crossclr_only_intra_modality.1} parent=31 // pred_check
        %p1859 = pneg %p57
      $region34: #{crossclr_only_intra_modality.1} parent=31 // pred_check_branch
        %1861 = sbr.rel (%p1859) target = $region36
      $region35: #{crossclr_only_intra_modality.1} parent=31 // pred_region
        %s1862 = smul.u32 16, %s13
        %p1863 = scmp.lt.s32.totalorder %s1862, 31
        %s1864 = scalar_select %p1863, %s1862, 31
        %s1865 = smul.addr %s1864, 8
        %s1866 = scalar_lea.vmem %s1, %s1865
      $region36: #{crossclr_only_intra_modality.1} parent=31 // pred_fallthru
        _
    $region32: #{crossclr_only_intra_modality.1} parent=5 // pred_fallthru
      _
  $region6: #{crossclr_only_intra_modality.1} parent=0 // loop_footer
    %s11 = sadd.s32 1, %s7
  $region7: #{crossclr_only_intra_modality.1} parent=0 // loop_footer_branch
    %6 = sbr.rel target = $region3
  $region8: #{crossclr_only_intra_modality.1} parent=0 // loop_exit
    _

</llo_original>
